<compile_context>
chip_gen: v6e
topology: v6e:2x2x1
jax: 0.10.0
libtpu: 0.0.40
codegen_flags: <defaults>
</compile_context>

<pallas_src>
import functools
import math

import jax
import jax.numpy as jnp
import numpy as np
from jax import lax
from jax.experimental import pallas as pl
from jax.experimental.pallas import tpu as pltpu

LN_EPS = 1e-5  # torch.nn.LayerNorm default


def _layernorm(t, w, b):
    # biased variance, matching torch.nn.LayerNorm (computed in float32)
    mu = jnp.mean(t, axis=-1, keepdims=True)
    var = jnp.mean((t - mu) ** 2, axis=-1, keepdims=True)
    return (t - mu) * lax.rsqrt(var + LN_EPS) * w + b


def _gelu_exact(t):
    # torch.nn.GELU(approximate='none')
    return 0.5 * t * (1.0 + lax.erf(t * (1.0 / math.sqrt(2.0))))


def fused_transformer_kernel(
    x_ref,                         # (N, L, E)   resident input (read at layer 0)
    ln1w_ref, ln1b_ref,            # (1, E), (1, E)
    wqkv_t_ref, bqkv_ref,          # (E, 3E) [pre-transposed], (1, 3E)
    wo_t_ref, bo_ref,              # (E, E)  [pre-transposed], (1, E)
    ln2w_ref, ln2b_ref,            # (1, E), (1, E)
    wfc_t_ref, bfc_ref,            # (E, 3E) [pre-transposed], (1, 3E)
    wproj_t_ref, bproj_ref,        # (3E, E) [pre-transposed], (1, E)
    o_ref,                         # (N, L, E)   resident output (written at last layer)
    x_acc,                         # VMEM scratch (N*L, E) f32: resident activation
    *, n_heads,
):
    N, L, E = x_ref.shape
    H = n_heads
    Dh = E // H
    scale = 1.0 / math.sqrt(Dh)
    layer = pl.program_id(0)

    @pl.when(layer == 0)
    def _():
        x_acc[...] = x_ref[...].reshape(N * L, E).astype(jnp.float32)

    x2 = x_acc[...]                                            # (N*L, E), rows = n*L + l

    # ---------------- attention branch: x += attn(LN1(x)) ----------------
    h = _layernorm(x2, ln1w_ref[...], ln1b_ref[...])
    qkv = jnp.dot(h, wqkv_t_ref[...],
                  preferred_element_type=jnp.float32) + bqkv_ref[...]
    qkv3 = qkv.reshape(N, L, 3 * E)

    heads = []
    for hh in range(H):                                        # small static head loop
        # scale folded into q: cheaper than scaling the (N, L, L) score tensor
        q = qkv3[:, :, hh * Dh:(hh + 1) * Dh] * scale           # (N, L, Dh)
        k = qkv3[:, :, E + hh * Dh:E + (hh + 1) * Dh]           # (N, L, Dh)
        v = qkv3[:, :, 2 * E + hh * Dh:2 * E + (hh + 1) * Dh]   # (N, L, Dh)
        s = jnp.einsum('nld,nmd->nlm', q, k,
                       preferred_element_type=jnp.float32)      # (N, L, L)
        s = s - jnp.max(s, axis=-1, keepdims=True)
        p = jnp.exp(s)
        p = p * pl.reciprocal(jnp.sum(p, axis=-1, keepdims=True), approx=True)
        heads.append(jnp.einsum('nlm,nmd->nld', p, v,
                                preferred_element_type=jnp.float32))  # (N, L, Dh)
    attn = jnp.concatenate(heads, axis=-1).reshape(N * L, E)
    attn = jnp.dot(attn, wo_t_ref[...],
                   preferred_element_type=jnp.float32) + bo_ref[...]
    x2 = x2 + attn

    # ---------------- MLP branch: x += MLP(LN2(x)) ----------------
    h2 = _layernorm(x2, ln2w_ref[...], ln2b_ref[...])
    fc = jnp.dot(h2, wfc_t_ref[...],
                 preferred_element_type=jnp.float32) + bfc_ref[...]
    g = _gelu_exact(fc)
    proj = jnp.dot(g, wproj_t_ref[...],
                   preferred_element_type=jnp.float32) + bproj_ref[...]
    x2 = x2 + proj

    x_acc[...] = x2

    @pl.when(layer == pl.num_programs(0) - 1)
    def _():
        o_ref[...] = x2.reshape(N, L, E).astype(o_ref.dtype)


def pack_params(layer_params):
    """Stack per-layer params along a leading layer axis; pre-transpose Linear weights
    (done ONCE, not per forward call)."""
    def stack(i, transpose=False):
        return jnp.stack([p[i].T if transpose else p[i] for p in layer_params], axis=0)
    return (
        stack(0), stack(1),            # ln1 w/b           (LAYERS, 1, E)
        stack(2, True), stack(3),      # wqkv_t, bqkv      (LAYERS, E, 3E), (LAYERS, 1, 3E)
        stack(4, True), stack(5),      # wo_t, bo          (LAYERS, E, E),  (LAYERS, 1, E)
        stack(6), stack(7),            # ln2 w/b           (LAYERS, 1, E)
        stack(8, True), stack(9),      # wfc_t, bfc        (LAYERS, E, 3E), (LAYERS, 1, 3E)
        stack(10, True), stack(11),    # wproj_t, bproj    (LAYERS, 3E, E), (LAYERS, 1, E)
    )


def transformer_forward(x, packed_params, n_heads):
    """Full Transformer forward (all layers) via a single pallas_call."""
    L, N, E = x.shape
    LAYERS = packed_params[0].shape[0]

    # layout plumbing (wrapper-side): batch-major inside the kernel so attention
    # batches cleanly over N with no in-kernel transposes.
    xb = jnp.transpose(x, (1, 0, 2))                 # (N, L, E)

    def _wspec(shape):
        # per-layer 2-D weight stacked over layers; layer axis squeezed in-kernel.
        return pl.BlockSpec((None,) + shape, lambda l: (l, 0, 0))

    in_specs = [
        pl.BlockSpec((N, L, E), lambda l: (0, 0, 0)),   # x (constant block -> resident)
        _wspec((1, E)), _wspec((1, E)),                 # ln1
        _wspec((E, 3 * E)), _wspec((1, 3 * E)),         # in_proj (qkv)
        _wspec((E, E)), _wspec((1, E)),                 # out_proj
        _wspec((1, E)), _wspec((1, E)),                 # ln2
        _wspec((E, 3 * E)), _wspec((1, 3 * E)),         # c_fc
        _wspec((3 * E, E)), _wspec((1, E)),             # c_proj
    ]
    out_specs = pl.BlockSpec((N, L, E), lambda l: (0, 0, 0))

    out = pl.pallas_call(
        functools.partial(fused_transformer_kernel, n_heads=n_heads),
        out_shape=jax.ShapeDtypeStruct((N, L, E), x.dtype),
        grid=(LAYERS,),
        in_specs=in_specs,
        out_specs=out_specs,
        scratch_shapes=[pltpu.VMEM((N * L, E), jnp.float32)],
        input_output_aliases={0: 0},
        compiler_params=pltpu.CompilerParams(
            dimension_semantics=("arbitrary",),          # layers are sequential
            vmem_limit_bytes=32 * 1024 * 1024,
        ),
    )(xb, *packed_params)

    return jnp.transpose(out, (1, 0, 2))                 # back to (L, N, E)


# ---------------- deterministic parameter init (PyTorch layouts) ----------------
def init_layer_params(key, width):
    E = width
    ks = jax.random.split(key, 8)
    s = 0.02
    ln1w = jnp.ones((1, E), jnp.float32)
    ln1b = jnp.zeros((1, E), jnp.float32)
    wqkv = jax.random.normal(ks[0], (3 * E, E), jnp.float32) * s   # in_proj_weight
    bqkv = jax.random.normal(ks[1], (1, 3 * E), jnp.float32) * s   # in_proj_bias
    wo = jax.random.normal(ks[2], (E, E), jnp.float32) * s         # out_proj.weight
    bo = jax.random.normal(ks[3], (1, E), jnp.float32) * s         # out_proj.bias
    ln2w = jnp.ones((1, E), jnp.float32)
    ln2b = jnp.zeros((1, E), jnp.float32)
    wfc = jax.random.normal(ks[4], (3 * E, E), jnp.float32) * s    # c_fc.weight
    bfc = jax.random.normal(ks[5], (1, 3 * E), jnp.float32) * s    # c_fc.bias
    wproj = jax.random.normal(ks[6], (E, 3 * E), jnp.float32) * s  # c_proj.weight
    bproj = jax.random.normal(ks[7], (1, E), jnp.float32) * s      # c_proj.bias
    return (ln1w, ln1b, wqkv, bqkv, wo, bo, ln2w, ln2b, wfc, bfc, wproj, bproj)


# ---------------- pure-JAX reference (for correctness check) ----------------
def layer_ref(x, params, n_heads):
    (ln1w, ln1b, wqkv, bqkv, wo, bo, ln2w, ln2b, wfc, bfc, wproj, bproj) = params
    L, N, E = x.shape
    H, Dh = n_heads, E // n_heads

    def ln(t, w, b):
        mu = t.mean(-1, keepdims=True)
        var = ((t - mu) ** 2).mean(-1, keepdims=True)
        return (t - mu) / jnp.sqrt(var + LN_EPS) * w.reshape(-1) + b.reshape(-1)

    h = ln(x, ln1w, ln1b)
    qkv = jnp.einsum('lne,fe->lnf', h, wqkv) + bqkv.reshape(-1)
    q, k, v = jnp.split(qkv, 3, axis=-1)
    q = q.reshape(L, N, H, Dh)
    k = k.reshape(L, N, H, Dh)
    v = v.reshape(L, N, H, Dh)
    s = jnp.einsum('lnhd,mnhd->nhlm', q, k) / math.sqrt(Dh)
    p = jax.nn.softmax(s, axis=-1)
    o = jnp.einsum('nhlm,mnhd->lnhd', p, v).reshape(L, N, E)
    o = jnp.einsum('lne,fe->lnf', o, wo) + bo.reshape(-1)
    x = x + o
    h2 = ln(x, ln2w, ln2b)
    fc = jnp.einsum('lne,fe->lnf', h2, wfc) + bfc.reshape(-1)
    g = 0.5 * fc * (1.0 + lax.erf(fc / math.sqrt(2.0)))
    pr = jnp.einsum('lnf,ef->lne', g, wproj) + bproj.reshape(-1)
    return x + pr


if __name__ == "__main__":
    # Transformer(width=32, n_heads=4, layers=2); x: (seq=8, batch=2, width=32)
    # TODO(synk): optional attn_mask not implemented (module default attn_mask=None).
    L, N, E, H, LAYERS = 8, 2, 32, 4, 2

    key = jax.random.PRNGKey(0)
    kx, kp = jax.random.split(key)
    x = jax.random.normal(kx, (L, N, E), dtype=jnp.float32)
    layer_params = [init_layer_params(jax.random.fold_in(kp, i), E) for i in range(LAYERS)]
    packed = pack_params(layer_params)

    fwd = jax.jit(functools.partial(transformer_forward, n_heads=H))
    out = jax.block_until_ready(fwd(x, packed))

    ref = x
    for p in layer_params:
        ref = layer_ref(ref, p, H)
    ref = jax.block_until_ready(ref)

    assert out.shape == (L, N, E) and out.dtype == jnp.float32
    err = float(np.max(np.abs(np.asarray(out) - np.asarray(ref))))
    assert np.allclose(np.asarray(out), np.asarray(ref), atol=2e-3, rtol=2e-3), err
    print("KERNEL_OK")
</pallas_src>

<mosaic_0001>
module attributes {stable_mosaic.version = 11 : i64} {
  func.func @fused_transformer_kernel(%arg0: i32, %arg1: memref<2x8x32xf32, #tpu.memory_space<vmem>>, %arg2: memref<1x1x32xf32, #tpu.memory_space<vmem>>, %arg3: memref<1x1x32xf32, #tpu.memory_space<vmem>>, %arg4: memref<1x32x96xf32, #tpu.memory_space<vmem>>, %arg5: memref<1x1x96xf32, #tpu.memory_space<vmem>>, %arg6: memref<1x32x32xf32, #tpu.memory_space<vmem>>, %arg7: memref<1x1x32xf32, #tpu.memory_space<vmem>>, %arg8: memref<1x1x32xf32, #tpu.memory_space<vmem>>, %arg9: memref<1x1x32xf32, #tpu.memory_space<vmem>>, %arg10: memref<1x32x96xf32, #tpu.memory_space<vmem>>, %arg11: memref<1x1x96xf32, #tpu.memory_space<vmem>>, %arg12: memref<1x96x32xf32, #tpu.memory_space<vmem>>, %arg13: memref<1x1x32xf32, #tpu.memory_space<vmem>>, %arg14: memref<2x8x32xf32, #tpu.memory_space<vmem>>, %arg15: memref<16x32xf32, #tpu.memory_space<vmem>>) attributes {dimension_semantics = [#tpu.dimension_semantics<arbitrary>], iteration_bounds = array<i64: 2>, scalar_prefetch = 0 : i64, scratch_operands = 1 : i64, tpu.core_type = #tpu.core_type<tc>, window_params = [{pipeline_mode = #tpu.pipeline_mode<synchronous>, transform_indices = @transform_0, window_bounds = array<i64: 2, 8, 32>}, {transform_indices = @transform_1, window_bounds = array<i64: 1, 1, 32>}, {transform_indices = @transform_2, window_bounds = array<i64: 1, 1, 32>}, {transform_indices = @transform_3, window_bounds = array<i64: 1, 32, 96>}, {transform_indices = @transform_4, window_bounds = array<i64: 1, 1, 96>}, {transform_indices = @transform_5, window_bounds = array<i64: 1, 32, 32>}, {transform_indices = @transform_6, window_bounds = array<i64: 1, 1, 32>}, {transform_indices = @transform_7, window_bounds = array<i64: 1, 1, 32>}, {transform_indices = @transform_8, window_bounds = array<i64: 1, 1, 32>}, {transform_indices = @transform_9, window_bounds = array<i64: 1, 32, 96>}, {transform_indices = @transform_10, window_bounds = array<i64: 1, 1, 96>}, {transform_indices = @transform_11, window_bounds = array<i64: 1, 96, 32>}, {transform_indices = @transform_12, window_bounds = array<i64: 1, 1, 32>}, {pipeline_mode = #tpu.pipeline_mode<synchronous>, transform_indices = @transform_13, window_bounds = array<i64: 2, 8, 32>}]} {
    %c0_i32 = arith.constant 0 : i32
    %0 = arith.cmpi eq, %arg0, %c0_i32 : i32
    %1 = arith.extui %0 : i1 to i32
    %c0_i32_0 = arith.constant 0 : i32
    %2 = arith.cmpi ne, %1, %c0_i32_0 : i32
    scf.if %2 {
      %c0_77 = arith.constant 0 : index
      %c0_78 = arith.constant 0 : index
      %c0_79 = arith.constant 0 : index
      %169 = vector.load %arg1[%c0_77, %c0_78, %c0_79] : memref<2x8x32xf32, #tpu.memory_space<vmem>>, vector<2x8x32xf32>
      %170 = vector.shape_cast %169 : vector<2x8x32xf32> to vector<16x32xf32>
      %c0_80 = arith.constant 0 : index
      %c0_81 = arith.constant 0 : index
      %171 = vector.load %arg15[%c0_80, %c0_81] : memref<16x32xf32, #tpu.memory_space<vmem>>, vector<16x32xf32>
      tpu.vector_store %arg15[%c0_80, %c0_81], %170 {strides = array<i32>} : memref<16x32xf32, #tpu.memory_space<vmem>>, vector<16x32xf32>,
    } else {
    }
    %c0 = arith.constant 0 : index
    %c0_1 = arith.constant 0 : index
    %3 = vector.load %arg15[%c0, %c0_1] : memref<16x32xf32, #tpu.memory_space<vmem>>, vector<16x32xf32>
    %c0_2 = arith.constant 0 : index
    %c0_3 = arith.constant 0 : index
    %c0_4 = arith.constant 0 : index
    %4 = vector.load %arg2[%c0_2, %c0_3, %c0_4] : memref<1x1x32xf32, #tpu.memory_space<vmem>>, vector<1x1x32xf32>
    %5 = vector.shape_cast %4 : vector<1x1x32xf32> to vector<1x32xf32>
    %c0_5 = arith.constant 0 : index
    %c0_6 = arith.constant 0 : index
    %c0_7 = arith.constant 0 : index
    %6 = vector.load %arg3[%c0_5, %c0_6, %c0_7] : memref<1x1x32xf32, #tpu.memory_space<vmem>>, vector<1x1x32xf32>
    %7 = vector.shape_cast %6 : vector<1x1x32xf32> to vector<1x32xf32>
    %cst = arith.constant dense<0.000000e+00> : vector<16xf32>
    %8 = vector.multi_reduction <add>, %3, %cst [1] : vector<16x32xf32> to vector<16xf32>
    %9 = vector.shape_cast %8 : vector<16xf32> to vector<16x1xf32>
    %cst_8 = arith.constant 3.200000e+01 : f32
    %10 = vector.broadcast %cst_8 : f32 to vector<16x1xf32>
    %11 = arith.divf %9, %10 : vector<16x1xf32>
    %12 = vector.broadcast %11 : vector<16x1xf32> to vector<16x32xf32>
    %13 = arith.subf %3, %12 : vector<16x32xf32>
    %14 = arith.mulf %13, %13 : vector<16x32xf32>
    %cst_9 = arith.constant dense<0.000000e+00> : vector<16xf32>
    %15 = vector.multi_reduction <add>, %14, %cst_9 [1] : vector<16x32xf32> to vector<16xf32>
    %16 = vector.shape_cast %15 : vector<16xf32> to vector<16x1xf32>
    %cst_10 = arith.constant 3.200000e+01 : f32
    %17 = vector.broadcast %cst_10 : f32 to vector<16x1xf32>
    %18 = arith.divf %16, %17 : vector<16x1xf32>
    %19 = vector.broadcast %11 : vector<16x1xf32> to vector<16x32xf32>
    %20 = arith.subf %3, %19 : vector<16x32xf32>
    %cst_11 = arith.constant 9.99999974E-6 : f32
    %21 = vector.broadcast %cst_11 : f32 to vector<16x1xf32>
    %22 = arith.addf %18, %21 : vector<16x1xf32>
    %23 = math.rsqrt %22 : vector<16x1xf32>
    %24 = vector.broadcast %23 : vector<16x1xf32> to vector<16x32xf32>
    %25 = arith.mulf %20, %24 : vector<16x32xf32>
    %26 = vector.broadcast %5 : vector<1x32xf32> to vector<16x32xf32>
    %27 = arith.mulf %25, %26 : vector<16x32xf32>
    %28 = vector.broadcast %7 : vector<1x32xf32> to vector<16x32xf32>
    %29 = arith.addf %27, %28 : vector<16x32xf32>
    %c0_12 = arith.constant 0 : index
    %c0_13 = arith.constant 0 : index
    %c0_14 = arith.constant 0 : index
    %30 = vector.load %arg4[%c0_12, %c0_13, %c0_14] : memref<1x32x96xf32, #tpu.memory_space<vmem>>, vector<1x32x96xf32>
    %31 = vector.shape_cast %30 : vector<1x32x96xf32> to vector<32x96xf32>
    %cst_15 = arith.constant dense<0.000000e+00> : vector<16x96xf32>
    %32 = tpu.matmul %29, %31, %cst_15 {dimension_numbers = #tpu.dot_dimension_numbers<[1], [0], [0], [1], [0, 0, 1, 1], [], []>} : vector<16x32xf32>, vector<32x96xf32>, vector<16x96xf32> -> vector<16x96xf32>
    %c0_16 = arith.constant 0 : index
    %c0_17 = arith.constant 0 : index
    %c0_18 = arith.constant 0 : index
    %33 = vector.load %arg5[%c0_16, %c0_17, %c0_18] : memref<1x1x96xf32, #tpu.memory_space<vmem>>, vector<1x1x96xf32>
    %34 = vector.shape_cast %33 : vector<1x1x96xf32> to vector<1x96xf32>
    %35 = vector.broadcast %34 : vector<1x96xf32> to vector<16x96xf32>
    %36 = arith.addf %32, %35 : vector<16x96xf32>
    %37 = vector.shape_cast %36 : vector<16x96xf32> to vector<2x8x96xf32>
    %38 = vector.extract_strided_slice %37 {offsets = [0, 0, 0], sizes = [2, 8, 8], strides = [1, 1, 1]} : vector<2x8x96xf32> to vector<2x8x8xf32>
    %cst_19 = arith.constant 0.353553385 : f32
    %39 = vector.broadcast %cst_19 : f32 to vector<2x8x8xf32>
    %40 = arith.mulf %38, %39 : vector<2x8x8xf32>
    %41 = vector.extract_strided_slice %37 {offsets = [0, 0, 32], sizes = [2, 8, 8], strides = [1, 1, 1]} : vector<2x8x96xf32> to vector<2x8x8xf32>
    %42 = vector.extract_strided_slice %37 {offsets = [0, 0, 64], sizes = [2, 8, 8], strides = [1, 1, 1]} : vector<2x8x96xf32> to vector<2x8x8xf32>
    "tpu.trace_start"() <{level = 10 : i32, message = "nld,nmd->nlm"}> : () -> ()
    %cst_20 = arith.constant dense<0.000000e+00> : vector<2x8x8xf32>
    %43 = tpu.matmul %40, %41, %cst_20 {dimension_numbers = #tpu.dot_dimension_numbers<[2], [2], [1], [1], [0, 0, 0, 1, 1, 1], [0], [0]>} : vector<2x8x8xf32>, vector<2x8x8xf32>, vector<2x8x8xf32> -> vector<2x8x8xf32>
    "tpu.trace_stop"() : () -> ()
    %cst_21 = arith.constant dense<0xFF800000> : vector<2x8xf32>
    %44 = vector.multi_reduction <maximumf>, %43, %cst_21 [2] : vector<2x8x8xf32> to vector<2x8xf32>
    %45 = vector.shape_cast %44 : vector<2x8xf32> to vector<2x8x1xf32>
    %46 = vector.broadcast %45 : vector<2x8x1xf32> to vector<2x8x8xf32>
    %47 = arith.subf %43, %46 : vector<2x8x8xf32>
    %48 = math.exp %47 : vector<2x8x8xf32>
    %cst_22 = arith.constant dense<0.000000e+00> : vector<2x8xf32>
    %49 = vector.multi_reduction <add>, %48, %cst_22 [2] : vector<2x8x8xf32> to vector<2x8xf32>
    %50 = vector.shape_cast %49 : vector<2x8xf32> to vector<2x8x1xf32>
    %51 = tpu.reciprocal %50 {approx = true} : vector<2x8x1xf32> -> vector<2x8x1xf32>
    %52 = vector.broadcast %51 : vector<2x8x1xf32> to vector<2x8x8xf32>
    %53 = arith.mulf %48, %52 : vector<2x8x8xf32>
    "tpu.trace_start"() <{level = 10 : i32, message = "nlm,nmd->nld"}> : () -> ()
    %cst_23 = arith.constant dense<0.000000e+00> : vector<2x8x8xf32>
    %54 = tpu.matmul %53, %42, %cst_23 {dimension_numbers = #tpu.dot_dimension_numbers<[2], [1], [1], [2], [0, 0, 0, 1, 1, 2], [0], [0]>} : vector<2x8x8xf32>, vector<2x8x8xf32>, vector<2x8x8xf32> -> vector<2x8x8xf32>
    "tpu.trace_stop"() : () -> ()
    %55 = vector.extract_strided_slice %37 {offsets = [0, 0, 8], sizes = [2, 8, 8], strides = [1, 1, 1]} : vector<2x8x96xf32> to vector<2x8x8xf32>
    %cst_24 = arith.constant 0.353553385 : f32
    %56 = vector.broadcast %cst_24 : f32 to vector<2x8x8xf32>
    %57 = arith.mulf %55, %56 : vector<2x8x8xf32>
    %58 = vector.extract_strided_slice %37 {offsets = [0, 0, 40], sizes = [2, 8, 8], strides = [1, 1, 1]} : vector<2x8x96xf32> to vector<2x8x8xf32>
    %59 = vector.extract_strided_slice %37 {offsets = [0, 0, 72], sizes = [2, 8, 8], strides = [1, 1, 1]} : vector<2x8x96xf32> to vector<2x8x8xf32>
    "tpu.trace_start"() <{level = 10 : i32, message = "nld,nmd->nlm"}> : () -> ()
    %cst_25 = arith.constant dense<0.000000e+00> : vector<2x8x8xf32>
    %60 = tpu.matmul %57, %58, %cst_25 {dimension_numbers = #tpu.dot_dimension_numbers<[2], [2], [1], [1], [0, 0, 0, 1, 1, 1], [0], [0]>} : vector<2x8x8xf32>, vector<2x8x8xf32>, vector<2x8x8xf32> -> vector<2x8x8xf32>
    "tpu.trace_stop"() : () -> ()
    %cst_26 = arith.constant dense<0xFF800000> : vector<2x8xf32>
    %61 = vector.multi_reduction <maximumf>, %60, %cst_26 [2] : vector<2x8x8xf32> to vector<2x8xf32>
    %62 = vector.shape_cast %61 : vector<2x8xf32> to vector<2x8x1xf32>
    %63 = vector.broadcast %62 : vector<2x8x1xf32> to vector<2x8x8xf32>
    %64 = arith.subf %60, %63 : vector<2x8x8xf32>
    %65 = math.exp %64 : vector<2x8x8xf32>
    %cst_27 = arith.constant dense<0.000000e+00> : vector<2x8xf32>
    %66 = vector.multi_reduction <add>, %65, %cst_27 [2] : vector<2x8x8xf32> to vector<2x8xf32>
    %67 = vector.shape_cast %66 : vector<2x8xf32> to vector<2x8x1xf32>
    %68 = tpu.reciprocal %67 {approx = true} : vector<2x8x1xf32> -> vector<2x8x1xf32>
    %69 = vector.broadcast %68 : vector<2x8x1xf32> to vector<2x8x8xf32>
    %70 = arith.mulf %65, %69 : vector<2x8x8xf32>
    "tpu.trace_start"() <{level = 10 : i32, message = "nlm,nmd->nld"}> : () -> ()
    %cst_28 = arith.constant dense<0.000000e+00> : vector<2x8x8xf32>
    %71 = tpu.matmul %70, %59, %cst_28 {dimension_numbers = #tpu.dot_dimension_numbers<[2], [1], [1], [2], [0, 0, 0, 1, 1, 2], [0], [0]>} : vector<2x8x8xf32>, vector<2x8x8xf32>, vector<2x8x8xf32> -> vector<2x8x8xf32>
    "tpu.trace_stop"() : () -> ()
    %72 = vector.extract_strided_slice %37 {offsets = [0, 0, 16], sizes = [2, 8, 8], strides = [1, 1, 1]} : vector<2x8x96xf32> to vector<2x8x8xf32>
    %cst_29 = arith.constant 0.353553385 : f32
    %73 = vector.broadcast %cst_29 : f32 to vector<2x8x8xf32>
    %74 = arith.mulf %72, %73 : vector<2x8x8xf32>
    %75 = vector.extract_strided_slice %37 {offsets = [0, 0, 48], sizes = [2, 8, 8], strides = [1, 1, 1]} : vector<2x8x96xf32> to vector<2x8x8xf32>
    %76 = vector.extract_strided_slice %37 {offsets = [0, 0, 80], sizes = [2, 8, 8], strides = [1, 1, 1]} : vector<2x8x96xf32> to vector<2x8x8xf32>
    "tpu.trace_start"() <{level = 10 : i32, message = "nld,nmd->nlm"}> : () -> ()
    %cst_30 = arith.constant dense<0.000000e+00> : vector<2x8x8xf32>
    %77 = tpu.matmul %74, %75, %cst_30 {dimension_numbers = #tpu.dot_dimension_numbers<[2], [2], [1], [1], [0, 0, 0, 1, 1, 1], [0], [0]>} : vector<2x8x8xf32>, vector<2x8x8xf32>, vector<2x8x8xf32> -> vector<2x8x8xf32>
    "tpu.trace_stop"() : () -> ()
    %cst_31 = arith.constant dense<0xFF800000> : vector<2x8xf32>
    %78 = vector.multi_reduction <maximumf>, %77, %cst_31 [2] : vector<2x8x8xf32> to vector<2x8xf32>
    %79 = vector.shape_cast %78 : vector<2x8xf32> to vector<2x8x1xf32>
    %80 = vector.broadcast %79 : vector<2x8x1xf32> to vector<2x8x8xf32>
    %81 = arith.subf %77, %80 : vector<2x8x8xf32>
    %82 = math.exp %81 : vector<2x8x8xf32>
    %cst_32 = arith.constant dense<0.000000e+00> : vector<2x8xf32>
    %83 = vector.multi_reduction <add>, %82, %cst_32 [2] : vector<2x8x8xf32> to vector<2x8xf32>
    %84 = vector.shape_cast %83 : vector<2x8xf32> to vector<2x8x1xf32>
    %85 = tpu.reciprocal %84 {approx = true} : vector<2x8x1xf32> -> vector<2x8x1xf32>
    %86 = vector.broadcast %85 : vector<2x8x1xf32> to vector<2x8x8xf32>
    %87 = arith.mulf %82, %86 : vector<2x8x8xf32>
    "tpu.trace_start"() <{level = 10 : i32, message = "nlm,nmd->nld"}> : () -> ()
    %cst_33 = arith.constant dense<0.000000e+00> : vector<2x8x8xf32>
    %88 = tpu.matmul %87, %76, %cst_33 {dimension_numbers = #tpu.dot_dimension_numbers<[2], [1], [1], [2], [0, 0, 0, 1, 1, 2], [0], [0]>} : vector<2x8x8xf32>, vector<2x8x8xf32>, vector<2x8x8xf32> -> vector<2x8x8xf32>
    "tpu.trace_stop"() : () -> ()
    %89 = vector.extract_strided_slice %37 {offsets = [0, 0, 24], sizes = [2, 8, 8], strides = [1, 1, 1]} : vector<2x8x96xf32> to vector<2x8x8xf32>
    %cst_34 = arith.constant 0.353553385 : f32
    %90 = vector.broadcast %cst_34 : f32 to vector<2x8x8xf32>
    %91 = arith.mulf %89, %90 : vector<2x8x8xf32>
    %92 = vector.extract_strided_slice %37 {offsets = [0, 0, 56], sizes = [2, 8, 8], strides = [1, 1, 1]} : vector<2x8x96xf32> to vector<2x8x8xf32>
    %93 = vector.extract_strided_slice %37 {offsets = [0, 0, 88], sizes = [2, 8, 8], strides = [1, 1, 1]} : vector<2x8x96xf32> to vector<2x8x8xf32>
    "tpu.trace_start"() <{level = 10 : i32, message = "nld,nmd->nlm"}> : () -> ()
    %cst_35 = arith.constant dense<0.000000e+00> : vector<2x8x8xf32>
    %94 = tpu.matmul %91, %92, %cst_35 {dimension_numbers = #tpu.dot_dimension_numbers<[2], [2], [1], [1], [0, 0, 0, 1, 1, 1], [0], [0]>} : vector<2x8x8xf32>, vector<2x8x8xf32>, vector<2x8x8xf32> -> vector<2x8x8xf32>
    "tpu.trace_stop"() : () -> ()
    %cst_36 = arith.constant dense<0xFF800000> : vector<2x8xf32>
    %95 = vector.multi_reduction <maximumf>, %94, %cst_36 [2] : vector<2x8x8xf32> to vector<2x8xf32>
    %96 = vector.shape_cast %95 : vector<2x8xf32> to vector<2x8x1xf32>
    %97 = vector.broadcast %96 : vector<2x8x1xf32> to vector<2x8x8xf32>
    %98 = arith.subf %94, %97 : vector<2x8x8xf32>
    %99 = math.exp %98 : vector<2x8x8xf32>
    %cst_37 = arith.constant dense<0.000000e+00> : vector<2x8xf32>
    %100 = vector.multi_reduction <add>, %99, %cst_37 [2] : vector<2x8x8xf32> to vector<2x8xf32>
    %101 = vector.shape_cast %100 : vector<2x8xf32> to vector<2x8x1xf32>
    %102 = tpu.reciprocal %101 {approx = true} : vector<2x8x1xf32> -> vector<2x8x1xf32>
    %103 = vector.broadcast %102 : vector<2x8x1xf32> to vector<2x8x8xf32>
    %104 = arith.mulf %99, %103 : vector<2x8x8xf32>
    "tpu.trace_start"() <{level = 10 : i32, message = "nlm,nmd->nld"}> : () -> ()
    %cst_38 = arith.constant dense<0.000000e+00> : vector<2x8x8xf32>
    %105 = tpu.matmul %104, %93, %cst_38 {dimension_numbers = #tpu.dot_dimension_numbers<[2], [1], [1], [2], [0, 0, 0, 1, 1, 2], [0], [0]>} : vector<2x8x8xf32>, vector<2x8x8xf32>, vector<2x8x8xf32> -> vector<2x8x8xf32>
    "tpu.trace_stop"() : () -> ()
    %106 = tpu.concatenate %54, %71, %88, %105 in 2 : vector<2x8x8xf32>, vector<2x8x8xf32>, vector<2x8x8xf32>, vector<2x8x8xf32> -> vector<2x8x32xf32>
    %107 = vector.shape_cast %106 : vector<2x8x32xf32> to vector<16x32xf32>
    %c0_39 = arith.constant 0 : index
    %c0_40 = arith.constant 0 : index
    %c0_41 = arith.constant 0 : index
    %108 = vector.load %arg6[%c0_39, %c0_40, %c0_41] : memref<1x32x32xf32, #tpu.memory_space<vmem>>, vector<1x32x32xf32>
    %109 = vector.shape_cast %108 : vector<1x32x32xf32> to vector<32x32xf32>
    %cst_42 = arith.constant dense<0.000000e+00> : vector<16x32xf32>
    %110 = tpu.matmul %107, %109, %cst_42 {dimension_numbers = #tpu.dot_dimension_numbers<[1], [0], [0], [1], [0, 0, 1, 1], [], []>} : vector<16x32xf32>, vector<32x32xf32>, vector<16x32xf32> -> vector<16x32xf32>
    %c0_43 = arith.constant 0 : index
    %c0_44 = arith.constant 0 : index
    %c0_45 = arith.constant 0 : index
    %111 = vector.load %arg7[%c0_43, %c0_44, %c0_45] : memref<1x1x32xf32, #tpu.memory_space<vmem>>, vector<1x1x32xf32>
    %112 = vector.shape_cast %111 : vector<1x1x32xf32> to vector<1x32xf32>
    %113 = vector.broadcast %112 : vector<1x32xf32> to vector<16x32xf32>
    %114 = arith.addf %110, %113 : vector<16x32xf32>
    %115 = arith.addf %3, %114 : vector<16x32xf32>
    %c0_46 = arith.constant 0 : index
    %c0_47 = arith.constant 0 : index
    %c0_48 = arith.constant 0 : index
    %116 = vector.load %arg8[%c0_46, %c0_47, %c0_48] : memref<1x1x32xf32, #tpu.memory_space<vmem>>, vector<1x1x32xf32>
    %117 = vector.shape_cast %116 : vector<1x1x32xf32> to vector<1x32xf32>
    %c0_49 = arith.constant 0 : index
    %c0_50 = arith.constant 0 : index
    %c0_51 = arith.constant 0 : index
    %118 = vector.load %arg9[%c0_49, %c0_50, %c0_51] : memref<1x1x32xf32, #tpu.memory_space<vmem>>, vector<1x1x32xf32>
    %119 = vector.shape_cast %118 : vector<1x1x32xf32> to vector<1x32xf32>
    %cst_52 = arith.constant dense<0.000000e+00> : vector<16xf32>
    %120 = vector.multi_reduction <add>, %115, %cst_52 [1] : vector<16x32xf32> to vector<16xf32>
    %121 = vector.shape_cast %120 : vector<16xf32> to vector<16x1xf32>
    %cst_53 = arith.constant 3.200000e+01 : f32
    %122 = vector.broadcast %cst_53 : f32 to vector<16x1xf32>
    %123 = arith.divf %121, %122 : vector<16x1xf32>
    %124 = vector.broadcast %123 : vector<16x1xf32> to vector<16x32xf32>
    %125 = arith.subf %115, %124 : vector<16x32xf32>
    %126 = arith.mulf %125, %125 : vector<16x32xf32>
    %cst_54 = arith.constant dense<0.000000e+00> : vector<16xf32>
    %127 = vector.multi_reduction <add>, %126, %cst_54 [1] : vector<16x32xf32> to vector<16xf32>
    %128 = vector.shape_cast %127 : vector<16xf32> to vector<16x1xf32>
    %cst_55 = arith.constant 3.200000e+01 : f32
    %129 = vector.broadcast %cst_55 : f32 to vector<16x1xf32>
    %130 = arith.divf %128, %129 : vector<16x1xf32>
    %131 = vector.broadcast %123 : vector<16x1xf32> to vector<16x32xf32>
    %132 = arith.subf %115, %131 : vector<16x32xf32>
    %cst_56 = arith.constant 9.99999974E-6 : f32
    %133 = vector.broadcast %cst_56 : f32 to vector<16x1xf32>
    %134 = arith.addf %130, %133 : vector<16x1xf32>
    %135 = math.rsqrt %134 : vector<16x1xf32>
    %136 = vector.broadcast %135 : vector<16x1xf32> to vector<16x32xf32>
    %137 = arith.mulf %132, %136 : vector<16x32xf32>
    %138 = vector.broadcast %117 : vector<1x32xf32> to vector<16x32xf32>
    %139 = arith.mulf %137, %138 : vector<16x32xf32>
    %140 = vector.broadcast %119 : vector<1x32xf32> to vector<16x32xf32>
    %141 = arith.addf %139, %140 : vector<16x32xf32>
    %c0_57 = arith.constant 0 : index
    %c0_58 = arith.constant 0 : index
    %c0_59 = arith.constant 0 : index
    %142 = vector.load %arg10[%c0_57, %c0_58, %c0_59] : memref<1x32x96xf32, #tpu.memory_space<vmem>>, vector<1x32x96xf32>
    %143 = vector.shape_cast %142 : vector<1x32x96xf32> to vector<32x96xf32>
    %cst_60 = arith.constant dense<0.000000e+00> : vector<16x96xf32>
    %144 = tpu.matmul %141, %143, %cst_60 {dimension_numbers = #tpu.dot_dimension_numbers<[1], [0], [0], [1], [0, 0, 1, 1], [], []>} : vector<16x32xf32>, vector<32x96xf32>, vector<16x96xf32> -> vector<16x96xf32>
    %c0_61 = arith.constant 0 : index
    %c0_62 = arith.constant 0 : index
    %c0_63 = arith.constant 0 : index
    %145 = vector.load %arg11[%c0_61, %c0_62, %c0_63] : memref<1x1x96xf32, #tpu.memory_space<vmem>>, vector<1x1x96xf32>
    %146 = vector.shape_cast %145 : vector<1x1x96xf32> to vector<1x96xf32>
    %147 = vector.broadcast %146 : vector<1x96xf32> to vector<16x96xf32>
    %148 = arith.addf %144, %147 : vector<16x96xf32>
    %cst_64 = arith.constant 5.000000e-01 : f32
    %149 = vector.broadcast %cst_64 : f32 to vector<16x96xf32>
    %150 = arith.mulf %149, %148 : vector<16x96xf32>
    %cst_65 = arith.constant 0.707106769 : f32
    %151 = vector.broadcast %cst_65 : f32 to vector<16x96xf32>
    %152 = arith.mulf %148, %151 : vector<16x96xf32>
    %153 = math.erf %152 : vector<16x96xf32>
    %cst_66 = arith.constant 1.000000e+00 : f32
    %154 = vector.broadcast %cst_66 : f32 to vector<16x96xf32>
    %155 = arith.addf %154, %153 : vector<16x96xf32>
    %156 = arith.mulf %150, %155 : vector<16x96xf32>
    %c0_67 = arith.constant 0 : index
    %c0_68 = arith.constant 0 : index
    %c0_69 = arith.constant 0 : index
    %157 = vector.load %arg12[%c0_67, %c0_68, %c0_69] : memref<1x96x32xf32, #tpu.memory_space<vmem>>, vector<1x96x32xf32>
    %158 = vector.shape_cast %157 : vector<1x96x32xf32> to vector<96x32xf32>
    %cst_70 = arith.constant dense<0.000000e+00> : vector<16x32xf32>
    %159 = tpu.matmul %156, %158, %cst_70 {dimension_numbers = #tpu.dot_dimension_numbers<[1], [0], [0], [1], [0, 0, 1, 1], [], []>} : vector<16x96xf32>, vector<96x32xf32>, vector<16x32xf32> -> vector<16x32xf32>
    %c0_71 = arith.constant 0 : index
    %c0_72 = arith.constant 0 : index
    %c0_73 = arith.constant 0 : index
    %160 = vector.load %arg13[%c0_71, %c0_72, %c0_73] : memref<1x1x32xf32, #tpu.memory_space<vmem>>, vector<1x1x32xf32>
    %161 = vector.shape_cast %160 : vector<1x1x32xf32> to vector<1x32xf32>
    %162 = vector.broadcast %161 : vector<1x32xf32> to vector<16x32xf32>
    %163 = arith.addf %159, %162 : vector<16x32xf32>
    %164 = arith.addf %115, %163 : vector<16x32xf32>
    %c0_74 = arith.constant 0 : index
    %c0_75 = arith.constant 0 : index
    %165 = vector.load %arg15[%c0_74, %c0_75] : memref<16x32xf32, #tpu.memory_space<vmem>>, vector<16x32xf32>
    tpu.vector_store %arg15[%c0_74, %c0_75], %164 {strides = array<i32>} : memref<16x32xf32, #tpu.memory_space<vmem>>, vector<16x32xf32>,
    %c1_i32 = arith.constant 1 : i32
    %166 = arith.cmpi eq, %arg0, %c1_i32 : i32
    %167 = arith.extui %166 : i1 to i32
    %c0_i32_76 = arith.constant 0 : i32
    %168 = arith.cmpi ne, %167, %c0_i32_76 : i32
    scf.if %168 {
      %169 = vector.shape_cast %164 : vector<16x32xf32> to vector<2x8x32xf32>
      %c0_77 = arith.constant 0 : index
      %c0_78 = arith.constant 0 : index
      %c0_79 = arith.constant 0 : index
      %170 = vector.load %arg14[%c0_77, %c0_78, %c0_79] : memref<2x8x32xf32, #tpu.memory_space<vmem>>, vector<2x8x32xf32>
      tpu.vector_store %arg14[%c0_77, %c0_78, %c0_79], %169 {strides = array<i32>} : memref<2x8x32xf32, #tpu.memory_space<vmem>>, vector<2x8x32xf32>,
    } else {
    }
    return
  }
  func.func @transform_0(%arg0: i32) -> (i32, i32, i32) {
    %c0_i32 = arith.constant 0 : i32
    %c0_i32_0 = arith.constant 0 : i32
    %c0_i32_1 = arith.constant 0 : i32
    %c0_i32_2 = arith.constant 0 : i32
    return %c0_i32, %c0_i32_0, %c0_i32_1 : i32, i32, i32
  }
  func.func @transform_1(%arg0: i32) -> (i32, i32, i32) {
    %c0_i32 = arith.constant 0 : i32
    %c0_i32_0 = arith.constant 0 : i32
    %c0_i32_1 = arith.constant 0 : i32
    return %arg0, %c0_i32, %c0_i32_0 : i32, i32, i32
  }
  func.func @transform_2(%arg0: i32) -> (i32, i32, i32) {
    %c0_i32 = arith.constant 0 : i32
    %c0_i32_0 = arith.constant 0 : i32
    %c0_i32_1 = arith.constant 0 : i32
    return %arg0, %c0_i32, %c0_i32_0 : i32, i32, i32
  }
  func.func @transform_3(%arg0: i32) -> (i32, i32, i32) {
    %c0_i32 = arith.constant 0 : i32
    %c0_i32_0 = arith.constant 0 : i32
    %c0_i32_1 = arith.constant 0 : i32
    return %arg0, %c0_i32, %c0_i32_0 : i32, i32, i32
  }
  func.func @transform_4(%arg0: i32) -> (i32, i32, i32) {
    %c0_i32 = arith.constant 0 : i32
    %c0_i32_0 = arith.constant 0 : i32
    %c0_i32_1 = arith.constant 0 : i32
    return %arg0, %c0_i32, %c0_i32_0 : i32, i32, i32
  }
  func.func @transform_5(%arg0: i32) -> (i32, i32, i32) {
    %c0_i32 = arith.constant 0 : i32
    %c0_i32_0 = arith.constant 0 : i32
    %c0_i32_1 = arith.constant 0 : i32
    return %arg0, %c0_i32, %c0_i32_0 : i32, i32, i32
  }
  func.func @transform_6(%arg0: i32) -> (i32, i32, i32) {
    %c0_i32 = arith.constant 0 : i32
    %c0_i32_0 = arith.constant 0 : i32
    %c0_i32_1 = arith.constant 0 : i32
    return %arg0, %c0_i32, %c0_i32_0 : i32, i32, i32
  }
  func.func @transform_7(%arg0: i32) -> (i32, i32, i32) {
    %c0_i32 = arith.constant 0 : i32
    %c0_i32_0 = arith.constant 0 : i32
    %c0_i32_1 = arith.constant 0 : i32
    return %arg0, %c0_i32, %c0_i32_0 : i32, i32, i32
  }
  func.func @transform_8(%arg0: i32) -> (i32, i32, i32) {
    %c0_i32 = arith.constant 0 : i32
    %c0_i32_0 = arith.constant 0 : i32
    %c0_i32_1 = arith.constant 0 : i32
    return %arg0, %c0_i32, %c0_i32_0 : i32, i32, i32
  }
  func.func @transform_9(%arg0: i32) -> (i32, i32, i32) {
    %c0_i32 = arith.constant 0 : i32
    %c0_i32_0 = arith.constant 0 : i32
    %c0_i32_1 = arith.constant 0 : i32
    return %arg0, %c0_i32, %c0_i32_0 : i32, i32, i32
  }
  func.func @transform_10(%arg0: i32) -> (i32, i32, i32) {
    %c0_i32 = arith.constant 0 : i32
    %c0_i32_0 = arith.constant 0 : i32
    %c0_i32_1 = arith.constant 0 : i32
    return %arg0, %c0_i32, %c0_i32_0 : i32, i32, i32
  }
  func.func @transform_11(%arg0: i32) -> (i32, i32, i32) {
    %c0_i32 = arith.constant 0 : i32
    %c0_i32_0 = arith.constant 0 : i32
    %c0_i32_1 = arith.constant 0 : i32
    return %arg0, %c0_i32, %c0_i32_0 : i32, i32, i32
  }
  func.func @transform_12(%arg0: i32) -> (i32, i32, i32) {
    %c0_i32 = arith.constant 0 : i32
    %c0_i32_0 = arith.constant 0 : i32
    %c0_i32_1 = arith.constant 0 : i32
    return %arg0, %c0_i32, %c0_i32_0 : i32, i32, i32
  }
  func.func @transform_13(%arg0: i32) -> (i32, i32, i32) {
    %c0_i32 = arith.constant 0 : i32
    %c0_i32_0 = arith.constant 0 : i32
    %c0_i32_1 = arith.constant 0 : i32
    %c0_i32_2 = arith.constant 0 : i32
    return %c0_i32, %c0_i32_0, %c0_i32_1 : i32, i32, i32
  }
}

</mosaic_0001>

<llo_original>
// kernel: transformer_forward.1
$region0: #{transformer_forward.1}
  #allocation0 [shape = 'u32[]', space=smem, size = 0x4, offset = 0x4, fixed_abs, tag = 'smem constant byte address 0x4 - core index']
  #allocation1 [shape = 'u32[144,128]{1,0:T(1,128)}', space=vmem, size = 0x12000, scoped, tag = 'internal scratch']
  #allocation2 [shape = 'f32[16,32]{1,0:T(8,128)}', space=vmem, size = 0x2000, scoped, tag = 'scratch operand']
  %s0 = inlined_call_operand.vmem [shape: f32[2,8,32], index: 0, kind: input, shape index: {}, may-alias: {0,13}]
  %s1 = inlined_call_operand.vmem [shape: f32[2,1,32], index: 1, kind: input, shape index: {}]
  %s2 = inlined_call_operand.vmem [shape: f32[2,1,32], index: 2, kind: input, shape index: {}]
  %s3 = inlined_call_operand.vmem [shape: f32[2,32,96], index: 3, kind: input, shape index: {}]
  %s4 = inlined_call_operand.vmem [shape: f32[2,1,96], index: 4, kind: input, shape index: {}]
  %s5 = inlined_call_operand.vmem [shape: f32[2,32,32], index: 5, kind: input, shape index: {}]
  %s6 = inlined_call_operand.vmem [shape: f32[2,1,32], index: 6, kind: input, shape index: {}]
  %s7 = inlined_call_operand.vmem [shape: f32[2,1,32], index: 7, kind: input, shape index: {}]
  %s8 = inlined_call_operand.vmem [shape: f32[2,1,32], index: 8, kind: input, shape index: {}]
  %s9 = inlined_call_operand.vmem [shape: f32[2,32,96], index: 9, kind: input, shape index: {}]
  %s10 = inlined_call_operand.vmem [shape: f32[2,1,96], index: 10, kind: input, shape index: {}]
  %s11 = inlined_call_operand.vmem [shape: f32[2,96,32], index: 11, kind: input, shape index: {}]
  %s12 = inlined_call_operand.vmem [shape: f32[2,1,32], index: 12, kind: input, shape index: {}]
  %s13 = inlined_call_operand.vmem [shape: f32[2,8,32], index: 13, kind: output, shape index: {}, may-alias: {0,13}]
  %s14 = sld [smem:[#allocation0]]
  $region93: #{transformer_forward.1} parent=0
    _
  %s16 = ssub.s32 1, %s14
  %s17 = scalar_select 0, %s16, %s14
  loop: start=0, step=1, limit=4
  $region2: #{transformer_forward.1} parent=0 // loop_pre_header
    _
  $region3: #{transformer_forward.1} parent=0 // loop_header
    %s19 = sphi 0, %s23
    %p20 = scmp.ge.s32.totalorder %s19, 4
    %s27 = sphi 0, %s27
    %s29 = sphi 0, %s27
    %s30 = sphi 0, %s29
    %s44 = sphi 0, %s30
    %s50 = sphi 0, %s52
    %s53 = sphi 0, %s50
    %s54 = sphi 0, %s53
    %s70 = sphi 0, %s54
    %s76 = sphi 0, %s78
    %s79 = sphi 0, %s76
    %s80 = sphi 0, %s79
    %s96 = sphi 0, %s80
    %s102 = sphi 0, %s104
    %s105 = sphi 0, %s102
    %s106 = sphi 0, %s105
    %s122 = sphi 0, %s106
    %s128 = sphi 0, %s130
    %s131 = sphi 0, %s128
    %s132 = sphi 0, %s131
    %s148 = sphi 0, %s132
    %s154 = sphi 0, %s156
    %s157 = sphi 0, %s154
    %s158 = sphi 0, %s157
    %s174 = sphi 0, %s158
    %s180 = sphi 0, %s182
    %s183 = sphi 0, %s180
    %s184 = sphi 0, %s183
    %s200 = sphi 0, %s184
    %s206 = sphi 0, %s208
    %s209 = sphi 0, %s206
    %s210 = sphi 0, %s209
    %s226 = sphi 0, %s210
    %s232 = sphi 0, %s234
    %s235 = sphi 0, %s232
    %s236 = sphi 0, %s235
    %s252 = sphi 0, %s236
    %s258 = sphi 0, %s260
    %s261 = sphi 0, %s258
    %s262 = sphi 0, %s261
    %s278 = sphi 0, %s262
    %s284 = sphi 0, %s286
    %s287 = sphi 0, %s284
    %s288 = sphi 0, %s287
    %s304 = sphi 0, %s288
    %s310 = sphi 0, %s312
    %s313 = sphi 0, %s310
    %s314 = sphi 0, %s313
    %s330 = sphi 0, %s314
    %s336 = sphi 0, %s338
    %s339 = sphi 0, %s336
    %s340 = sphi 0, %s339
    %s356 = sphi 0, %s340
    %s360 = sphi 0, %s360
    %s362 = sphi 0, %s360
    %s363 = sphi 0, %s362
    %s377 = sphi 0, %s363
  $region4: #{transformer_forward.1} parent=0 // loop_header_branch
    %22 = sbr.rel (%p20) target = $region8
  $region5: #{transformer_forward.1} parent=0 // loop_body
    %s24 = ssub.s32 %s19, 1
    %s25 = ssub.s32 %s19, 2
    %s26 = sadd.s32 %s19, 1
    %s28 = sadd.s32 %s27, 1
    %p31 = scmp.eq.s32.totalorder %s19, 1
    %p32 = scmp.ne.s32.totalorder %s27, %s29
    %p33 = scmp.eq.s32.totalorder %s19, 0
    %p34 = por %p32, %p33
    %p35 = scmp.ne.s32.totalorder %s27, %s29
    %p36 = scmp.eq.s32.totalorder %s24, 1
    %p37 = por %p35, %p36
    %p38 = scmp.ne.s32.totalorder %s29, %s30
    %p39 = scmp.eq.s32.totalorder %s24, 0
    %p40 = por %p38, %p39
    %p41 = scmp.ne.s32.totalorder %s29, %s30
    %p42 = scmp.eq.s32.totalorder %s25, 1
    %p43 = por %p41, %p42
    %p45 = scmp.ne.s32.totalorder %s30, %s44
    %p46 = scmp.eq.s32.totalorder %s25, 0
    %p47 = por %p45, %p46
    %s48 = ssub.s32 %s19, %s26
    %p49 = scmp.eq.s32.totalorder %s48, 0
    %s51 = sadd.s32 %s50, 1
    %s52 = scalar_select %p49, %s50, %s51
    %p55 = pneg %p49
    %p56 = scmp.eq.s32.totalorder %s19, 1
    %p57 = por %p55, %p56
    %p58 = scmp.ne.s32.totalorder %s50, %s53
    %p59 = scmp.eq.s32.totalorder %s19, 0
    %p60 = por %p58, %p59
    %p61 = scmp.ne.s32.totalorder %s50, %s53
    %p62 = scmp.eq.s32.totalorder %s24, 1
    %p63 = por %p61, %p62
    %p64 = scmp.ne.s32.totalorder %s53, %s54
    %p65 = scmp.eq.s32.totalorder %s24, 0
    %p66 = por %p64, %p65
    %p67 = scmp.ne.s32.totalorder %s53, %s54
    %p68 = scmp.eq.s32.totalorder %s25, 1
    %p69 = por %p67, %p68
    %p71 = scmp.ne.s32.totalorder %s54, %s70
    %p72 = scmp.eq.s32.totalorder %s25, 0
    %p73 = por %p71, %p72
    %s74 = ssub.s32 %s19, %s26
    %p75 = scmp.eq.s32.totalorder %s74, 0
    %s77 = sadd.s32 %s76, 1
    %s78 = scalar_select %p75, %s76, %s77
    %p81 = pneg %p75
    %p82 = scmp.eq.s32.totalorder %s19, 1
    %p83 = por %p81, %p82
    %p84 = scmp.ne.s32.totalorder %s76, %s79
    %p85 = scmp.eq.s32.totalorder %s19, 0
    %p86 = por %p84, %p85
    %p87 = scmp.ne.s32.totalorder %s76, %s79
    %p88 = scmp.eq.s32.totalorder %s24, 1
    %p89 = por %p87, %p88
    %p90 = scmp.ne.s32.totalorder %s79, %s80
    %p91 = scmp.eq.s32.totalorder %s24, 0
    %p92 = por %p90, %p91
    %p93 = scmp.ne.s32.totalorder %s79, %s80
    %p94 = scmp.eq.s32.totalorder %s25, 1
    %p95 = por %p93, %p94
    %p97 = scmp.ne.s32.totalorder %s80, %s96
    %p98 = scmp.eq.s32.totalorder %s25, 0
    %p99 = por %p97, %p98
    %s100 = ssub.s32 %s19, %s26
    %p101 = scmp.eq.s32.totalorder %s100, 0
    %s103 = sadd.s32 %s102, 1
    %s104 = scalar_select %p101, %s102, %s103
    %p107 = pneg %p101
    %p108 = scmp.eq.s32.totalorder %s19, 1
    %p109 = por %p107, %p108
    %p110 = scmp.ne.s32.totalorder %s102, %s105
    %p111 = scmp.eq.s32.totalorder %s19, 0
    %p112 = por %p110, %p111
    %p113 = scmp.ne.s32.totalorder %s102, %s105
    %p114 = scmp.eq.s32.totalorder %s24, 1
    %p115 = por %p113, %p114
    %p116 = scmp.ne.s32.totalorder %s105, %s106
    %p117 = scmp.eq.s32.totalorder %s24, 0
    %p118 = por %p116, %p117
    %p119 = scmp.ne.s32.totalorder %s105, %s106
    %p120 = scmp.eq.s32.totalorder %s25, 1
    %p121 = por %p119, %p120
    %p123 = scmp.ne.s32.totalorder %s106, %s122
    %p124 = scmp.eq.s32.totalorder %s25, 0
    %p125 = por %p123, %p124
    %s126 = ssub.s32 %s19, %s26
    %p127 = scmp.eq.s32.totalorder %s126, 0
    %s129 = sadd.s32 %s128, 1
    %s130 = scalar_select %p127, %s128, %s129
    %p133 = pneg %p127
    %p134 = scmp.eq.s32.totalorder %s19, 1
    %p135 = por %p133, %p134
    %p136 = scmp.ne.s32.totalorder %s128, %s131
    %p137 = scmp.eq.s32.totalorder %s19, 0
    %p138 = por %p136, %p137
    %p139 = scmp.ne.s32.totalorder %s128, %s131
    %p140 = scmp.eq.s32.totalorder %s24, 1
    %p141 = por %p139, %p140
    %p142 = scmp.ne.s32.totalorder %s131, %s132
    %p143 = scmp.eq.s32.totalorder %s24, 0
    %p144 = por %p142, %p143
    %p145 = scmp.ne.s32.totalorder %s131, %s132
    %p146 = scmp.eq.s32.totalorder %s25, 1
    %p147 = por %p145, %p146
    %p149 = scmp.ne.s32.totalorder %s132, %s148
    %p150 = scmp.eq.s32.totalorder %s25, 0
    %p151 = por %p149, %p150
    %s152 = ssub.s32 %s19, %s26
    %p153 = scmp.eq.s32.totalorder %s152, 0
    %s155 = sadd.s32 %s154, 1
    %s156 = scalar_select %p153, %s154, %s155
    %p159 = pneg %p153
    %p160 = scmp.eq.s32.totalorder %s19, 1
    %p161 = por %p159, %p160
    %p162 = scmp.ne.s32.totalorder %s154, %s157
    %p163 = scmp.eq.s32.totalorder %s19, 0
    %p164 = por %p162, %p163
    %p165 = scmp.ne.s32.totalorder %s154, %s157
    %p166 = scmp.eq.s32.totalorder %s24, 1
    %p167 = por %p165, %p166
    %p168 = scmp.ne.s32.totalorder %s157, %s158
    %p169 = scmp.eq.s32.totalorder %s24, 0
    %p170 = por %p168, %p169
    %p171 = scmp.ne.s32.totalorder %s157, %s158
    %p172 = scmp.eq.s32.totalorder %s25, 1
    %p173 = por %p171, %p172
    %p175 = scmp.ne.s32.totalorder %s158, %s174
    %p176 = scmp.eq.s32.totalorder %s25, 0
    %p177 = por %p175, %p176
    %s178 = ssub.s32 %s19, %s26
    %p179 = scmp.eq.s32.totalorder %s178, 0
    %s181 = sadd.s32 %s180, 1
    %s182 = scalar_select %p179, %s180, %s181
    %p185 = pneg %p179
    %p186 = scmp.eq.s32.totalorder %s19, 1
    %p187 = por %p185, %p186
    %p188 = scmp.ne.s32.totalorder %s180, %s183
    %p189 = scmp.eq.s32.totalorder %s19, 0
    %p190 = por %p188, %p189
    %p191 = scmp.ne.s32.totalorder %s180, %s183
    %p192 = scmp.eq.s32.totalorder %s24, 1
    %p193 = por %p191, %p192
    %p194 = scmp.ne.s32.totalorder %s183, %s184
    %p195 = scmp.eq.s32.totalorder %s24, 0
    %p196 = por %p194, %p195
    %p197 = scmp.ne.s32.totalorder %s183, %s184
    %p198 = scmp.eq.s32.totalorder %s25, 1
    %p199 = por %p197, %p198
    %p201 = scmp.ne.s32.totalorder %s184, %s200
    %p202 = scmp.eq.s32.totalorder %s25, 0
    %p203 = por %p201, %p202
    %s204 = ssub.s32 %s19, %s26
    %p205 = scmp.eq.s32.totalorder %s204, 0
    %s207 = sadd.s32 %s206, 1
    %s208 = scalar_select %p205, %s206, %s207
    %p211 = pneg %p205
    %p212 = scmp.eq.s32.totalorder %s19, 1
    %p213 = por %p211, %p212
    %p214 = scmp.ne.s32.totalorder %s206, %s209
    %p215 = scmp.eq.s32.totalorder %s19, 0
    %p216 = por %p214, %p215
    %p217 = scmp.ne.s32.totalorder %s206, %s209
    %p218 = scmp.eq.s32.totalorder %s24, 1
    %p219 = por %p217, %p218
    %p220 = scmp.ne.s32.totalorder %s209, %s210
    %p221 = scmp.eq.s32.totalorder %s24, 0
    %p222 = por %p220, %p221
    %p223 = scmp.ne.s32.totalorder %s209, %s210
    %p224 = scmp.eq.s32.totalorder %s25, 1
    %p225 = por %p223, %p224
    %p227 = scmp.ne.s32.totalorder %s210, %s226
    %p228 = scmp.eq.s32.totalorder %s25, 0
    %p229 = por %p227, %p228
    %s230 = ssub.s32 %s19, %s26
    %p231 = scmp.eq.s32.totalorder %s230, 0
    %s233 = sadd.s32 %s232, 1
    %s234 = scalar_select %p231, %s232, %s233
    %p237 = pneg %p231
    %p238 = scmp.eq.s32.totalorder %s19, 1
    %p239 = por %p237, %p238
    %p240 = scmp.ne.s32.totalorder %s232, %s235
    %p241 = scmp.eq.s32.totalorder %s19, 0
    %p242 = por %p240, %p241
    %p243 = scmp.ne.s32.totalorder %s232, %s235
    %p244 = scmp.eq.s32.totalorder %s24, 1
    %p245 = por %p243, %p244
    %p246 = scmp.ne.s32.totalorder %s235, %s236
    %p247 = scmp.eq.s32.totalorder %s24, 0
    %p248 = por %p246, %p247
    %p249 = scmp.ne.s32.totalorder %s235, %s236
    %p250 = scmp.eq.s32.totalorder %s25, 1
    %p251 = por %p249, %p250
    %p253 = scmp.ne.s32.totalorder %s236, %s252
    %p254 = scmp.eq.s32.totalorder %s25, 0
    %p255 = por %p253, %p254
    %s256 = ssub.s32 %s19, %s26
    %p257 = scmp.eq.s32.totalorder %s256, 0
    %s259 = sadd.s32 %s258, 1
    %s260 = scalar_select %p257, %s258, %s259
    %p263 = pneg %p257
    %p264 = scmp.eq.s32.totalorder %s19, 1
    %p265 = por %p263, %p264
    %p266 = scmp.ne.s32.totalorder %s258, %s261
    %p267 = scmp.eq.s32.totalorder %s19, 0
    %p268 = por %p266, %p267
    %p269 = scmp.ne.s32.totalorder %s258, %s261
    %p270 = scmp.eq.s32.totalorder %s24, 1
    %p271 = por %p269, %p270
    %p272 = scmp.ne.s32.totalorder %s261, %s262
    %p273 = scmp.eq.s32.totalorder %s24, 0
    %p274 = por %p272, %p273
    %p275 = scmp.ne.s32.totalorder %s261, %s262
    %p276 = scmp.eq.s32.totalorder %s25, 1
    %p277 = por %p275, %p276
    %p279 = scmp.ne.s32.totalorder %s262, %s278
    %p280 = scmp.eq.s32.totalorder %s25, 0
    %p281 = por %p279, %p280
    %s282 = ssub.s32 %s19, %s26
    %p283 = scmp.eq.s32.totalorder %s282, 0
    %s285 = sadd.s32 %s284, 1
    %s286 = scalar_select %p283, %s284, %s285
    %p289 = pneg %p283
    %p290 = scmp.eq.s32.totalorder %s19, 1
    %p291 = por %p289, %p290
    %p292 = scmp.ne.s32.totalorder %s284, %s287
    %p293 = scmp.eq.s32.totalorder %s19, 0
    %p294 = por %p292, %p293
    %p295 = scmp.ne.s32.totalorder %s284, %s287
    %p296 = scmp.eq.s32.totalorder %s24, 1
    %p297 = por %p295, %p296
    %p298 = scmp.ne.s32.totalorder %s287, %s288
    %p299 = scmp.eq.s32.totalorder %s24, 0
    %p300 = por %p298, %p299
    %p301 = scmp.ne.s32.totalorder %s287, %s288
    %p302 = scmp.eq.s32.totalorder %s25, 1
    %p303 = por %p301, %p302
    %p305 = scmp.ne.s32.totalorder %s288, %s304
    %p306 = scmp.eq.s32.totalorder %s25, 0
    %p307 = por %p305, %p306
    %s308 = ssub.s32 %s19, %s26
    %p309 = scmp.eq.s32.totalorder %s308, 0
    %s311 = sadd.s32 %s310, 1
    %s312 = scalar_select %p309, %s310, %s311
    %p315 = pneg %p309
    %p316 = scmp.eq.s32.totalorder %s19, 1
    %p317 = por %p315, %p316
    %p318 = scmp.ne.s32.totalorder %s310, %s313
    %p319 = scmp.eq.s32.totalorder %s19, 0
    %p320 = por %p318, %p319
    %p321 = scmp.ne.s32.totalorder %s310, %s313
    %p322 = scmp.eq.s32.totalorder %s24, 1
    %p323 = por %p321, %p322
    %p324 = scmp.ne.s32.totalorder %s313, %s314
    %p325 = scmp.eq.s32.totalorder %s24, 0
    %p326 = por %p324, %p325
    %p327 = scmp.ne.s32.totalorder %s313, %s314
    %p328 = scmp.eq.s32.totalorder %s25, 1
    %p329 = por %p327, %p328
    %p331 = scmp.ne.s32.totalorder %s314, %s330
    %p332 = scmp.eq.s32.totalorder %s25, 0
    %p333 = por %p331, %p332
    %s334 = ssub.s32 %s19, %s26
    %p335 = scmp.eq.s32.totalorder %s334, 0
    %s337 = sadd.s32 %s336, 1
    %s338 = scalar_select %p335, %s336, %s337
    %p341 = pneg %p335
    %p342 = scmp.eq.s32.totalorder %s19, 1
    %p343 = por %p341, %p342
    %p344 = scmp.ne.s32.totalorder %s336, %s339
    %p345 = scmp.eq.s32.totalorder %s19, 0
    %p346 = por %p344, %p345
    %p347 = scmp.ne.s32.totalorder %s336, %s339
    %p348 = scmp.eq.s32.totalorder %s24, 1
    %p349 = por %p347, %p348
    %p350 = scmp.ne.s32.totalorder %s339, %s340
    %p351 = scmp.eq.s32.totalorder %s24, 0
    %p352 = por %p350, %p351
    %p353 = scmp.ne.s32.totalorder %s339, %s340
    %p354 = scmp.eq.s32.totalorder %s25, 1
    %p355 = por %p353, %p354
    %p357 = scmp.ne.s32.totalorder %s340, %s356
    %p358 = scmp.eq.s32.totalorder %s25, 0
    %p359 = por %p357, %p358
    %s361 = sadd.s32 %s360, 1
    %p364 = scmp.eq.s32.totalorder %s19, 1
    %p365 = scmp.ne.s32.totalorder %s360, %s362
    %p366 = scmp.eq.s32.totalorder %s19, 0
    %p367 = por %p365, %p366
    %p368 = scmp.ne.s32.totalorder %s360, %s362
    %p369 = scmp.eq.s32.totalorder %s24, 1
    %p370 = por %p368, %p369
    %p371 = scmp.ne.s32.totalorder %s362, %s363
    %p372 = scmp.eq.s32.totalorder %s24, 0
    %p373 = por %p371, %p372
    %p374 = scmp.ne.s32.totalorder %s362, %s363
    %p375 = scmp.eq.s32.totalorder %s25, 1
    %p376 = por %p374, %p375
    %p378 = scmp.ne.s32.totalorder %s363, %s377
    %p379 = scmp.eq.s32.totalorder %s25, 0
    %p380 = por %p378, %p379
    %p381 = scmp.le.s32.totalorder 1, %s19
    %p382 = scmp.lt.s32.totalorder %s19, 3
    %p383 = pnand %p381, %p382
    %p384 = pneg %p383
    // Predicated region
    $region9: #{transformer_forward.1} parent=5 // pred_check
      _
    $region10: #{transformer_forward.1} parent=5 // pred_check_branch
      %386 = sbr.rel (%p383) target = $region12
    $region11: #{transformer_forward.1} parent=5 // pred_region
      %s387 = ssub.s32 %s19, 1
      // Predicated region
      $region13: #{transformer_forward.1} parent=11 // pred_check
        %p388 = pneg %p40
      $region14: #{transformer_forward.1} parent=11 // pred_check_branch
        %390 = sbr.rel (%p388) target = $region16
      $region15: #{transformer_forward.1} parent=11 // pred_region
        _
      $region16: #{transformer_forward.1} parent=11 // pred_fallthru
        _
    $region12: #{transformer_forward.1} parent=5 // pred_fallthru
      _
    %p391 = scmp.lt.s32.totalorder %s19, 2
    // Predicated region
    $region17: #{transformer_forward.1} parent=5 // pred_check
      %p392 = pneg %p391
    $region18: #{transformer_forward.1} parent=5 // pred_check_branch
      %394 = sbr.rel (%p392) target = $region20
    $region19: #{transformer_forward.1} parent=5 // pred_region
      // Predicated region
      $region21: #{transformer_forward.1} parent=19 // pred_check
        %p395 = pneg %p60
      $region22: #{transformer_forward.1} parent=19 // pred_check_branch
        %397 = sbr.rel (%p395) target = $region24
      $region23: #{transformer_forward.1} parent=19 // pred_region
        %p398 = scmp.lt.s32.totalorder %s19, 1
        %s399 = scalar_select %p398, %s19, 1
        %s400 = scalar_lea.vmem %s1, %s399
      $region24: #{transformer_forward.1} parent=19 // pred_fallthru
        _
      // Predicated region
      $region25: #{transformer_forward.1} parent=19 // pred_check
        %p401 = pneg %p86
      $region26: #{transformer_forward.1} parent=19 // pred_check_branch
        %403 = sbr.rel (%p401) target = $region28
      $region27: #{transformer_forward.1} parent=19 // pred_region
        %p404 = scmp.lt.s32.totalorder %s19, 1
        %s405 = scalar_select %p404, %s19, 1
        %s406 = scalar_lea.vmem %s2, %s405
      $region28: #{transformer_forward.1} parent=19 // pred_fallthru
        _
      // Predicated region
      $region29: #{transformer_forward.1} parent=19 // pred_check
        %p407 = pneg %p112
      $region30: #{transformer_forward.1} parent=19 // pred_check_branch
        %409 = sbr.rel (%p407) target = $region32
      $region31: #{transformer_forward.1} parent=19 // pred_region
        %p410 = scmp.lt.s32.totalorder %s19, 1
        %s411 = scalar_select %p410, %s19, 1
        %s412 = smul.addr %s411, 4
        %s413 = smul.addr %s412, 8
        %s414 = scalar_lea.vmem %s3, %s413
      $region32: #{transformer_forward.1} parent=19 // pred_fallthru
        _
      // Predicated region
      $region33: #{transformer_forward.1} parent=19 // pred_check
        %p415 = pneg %p138
      $region34: #{transformer_forward.1} parent=19 // pred_check_branch
        %417 = sbr.rel (%p415) target = $region36
      $region35: #{transformer_forward.1} parent=19 // pred_region
        %p418 = scmp.lt.s32.totalorder %s19, 1
        %s419 = scalar_select %p418, %s19, 1
        %s420 = scalar_lea.vmem %s4, %s419
      $region36: #{transformer_forward.1} parent=19 // pred_fallthru
        _
      // Predicated region
      $region37: #{transformer_forward.1} parent=19 // pred_check
        %p421 = pneg %p164
      $region38: #{transformer_forward.1} parent=19 // pred_check_branch
        %423 = sbr.rel (%p421) target = $region40
      $region39: #{transformer_forward.1} parent=19 // pred_region
        %p424 = scmp.lt.s32.totalorder %s19, 1
        %s425 = scalar_select %p424, %s19, 1
        %s426 = smul.addr %s425, 4
        %s427 = smul.addr %s426, 8
        %s428 = scalar_lea.vmem %s5, %s427
      $region40: #{transformer_forward.1} parent=19 // pred_fallthru
        _
      // Predicated region
      $region41: #{transformer_forward.1} parent=19 // pred_check
        %p429 = pneg %p190
      $region42: #{transformer_forward.1} parent=19 // pred_check_branch
        %431 = sbr.rel (%p429) target = $region44
      $region43: #{transformer_forward.1} parent=19 // pred_region
        %p432 = scmp.lt.s32.totalorder %s19, 1
        %s433 = scalar_select %p432, %s19, 1
        %s434 = scalar_lea.vmem %s6, %s433
      $region44: #{transformer_forward.1} parent=19 // pred_fallthru
        _
      // Predicated region
      $region45: #{transformer_forward.1} parent=19 // pred_check
        %p435 = pneg %p216
      $region46: #{transformer_forward.1} parent=19 // pred_check_branch
        %437 = sbr.rel (%p435) target = $region48
      $region47: #{transformer_forward.1} parent=19 // pred_region
        %p438 = scmp.lt.s32.totalorder %s19, 1
        %s439 = scalar_select %p438, %s19, 1
        %s440 = scalar_lea.vmem %s7, %s439
      $region48: #{transformer_forward.1} parent=19 // pred_fallthru
        _
      // Predicated region
      $region49: #{transformer_forward.1} parent=19 // pred_check
        %p441 = pneg %p242
      $region50: #{transformer_forward.1} parent=19 // pred_check_branch
        %443 = sbr.rel (%p441) target = $region52
      $region51: #{transformer_forward.1} parent=19 // pred_region
        %p444 = scmp.lt.s32.totalorder %s19, 1
        %s445 = scalar_select %p444, %s19, 1
        %s446 = scalar_lea.vmem %s8, %s445
      $region52: #{transformer_forward.1} parent=19 // pred_fallthru
        _
      // Predicated region
      $region53: #{transformer_forward.1} parent=19 // pred_check
        %p447 = pneg %p268
      $region54: #{transformer_forward.1} parent=19 // pred_check_branch
        %449 = sbr.rel (%p447) target = $region56
      $region55: #{transformer_forward.1} parent=19 // pred_region
        %p450 = scmp.lt.s32.totalorder %s19, 1
        %s451 = scalar_select %p450, %s19, 1
        %s452 = smul.addr %s451, 4
        %s453 = smul.addr %s452, 8
        %s454 = scalar_lea.vmem %s9, %s453
      $region56: #{transformer_forward.1} parent=19 // pred_fallthru
        _
      // Predicated region
      $region57: #{transformer_forward.1} parent=19 // pred_check
        %p455 = pneg %p294
      $region58: #{transformer_forward.1} parent=19 // pred_check_branch
        %457 = sbr.rel (%p455) target = $region60
      $region59: #{transformer_forward.1} parent=19 // pred_region
        %p458 = scmp.lt.s32.totalorder %s19, 1
        %s459 = scalar_select %p458, %s19, 1
        %s460 = scalar_lea.vmem %s10, %s459
      $region60: #{transformer_forward.1} parent=19 // pred_fallthru
        _
      // Predicated region
      $region61: #{transformer_forward.1} parent=19 // pred_check
        %p461 = pneg %p320
      $region62: #{transformer_forward.1} parent=19 // pred_check_branch
        %463 = sbr.rel (%p461) target = $region64
      $region63: #{transformer_forward.1} parent=19 // pred_region
        %p464 = scmp.lt.s32.totalorder %s19, 1
        %s465 = scalar_select %p464, %s19, 1
        %s466 = smul.addr %s465, 12
        %s467 = smul.addr %s466, 8
        %s468 = scalar_lea.vmem %s11, %s467
      $region64: #{transformer_forward.1} parent=19 // pred_fallthru
        _
      // Predicated region
      $region65: #{transformer_forward.1} parent=19 // pred_check
        %p469 = pneg %p346
      $region66: #{transformer_forward.1} parent=19 // pred_check_branch
        %471 = sbr.rel (%p469) target = $region68
      $region67: #{transformer_forward.1} parent=19 // pred_region
        %p472 = scmp.lt.s32.totalorder %s19, 1
        %s473 = scalar_select %p472, %s19, 1
        %s474 = scalar_lea.vmem %s12, %s473
      $region68: #{transformer_forward.1} parent=19 // pred_fallthru
        _
    $region20: #{transformer_forward.1} parent=5 // pred_fallthru
      _
    %p475 = scmp.le.s32.totalorder 1, %s19
    %p476 = scmp.lt.s32.totalorder %s19, 3
    %p477 = pnand %p475, %p476
    %p478 = pneg %p477
    // Predicated region
    $region69: #{transformer_forward.1} parent=5 // pred_check
      _
    $region70: #{transformer_forward.1} parent=5 // pred_check_branch
      %480 = sbr.rel (%p477) target = $region72
    $region71: #{transformer_forward.1} parent=5 // pred_region
      %s481 = ssub.s32 %s19, 1
      %p482 = pneg %p40
      %p483 = pneg %p37
      %p484 = scmp.lt.s32.totalorder %s24, 1
      %s485 = scalar_select %p484, %s24, 1
      %s486 = scalar_lea.vmem %s1, %s485
      %p487 = pneg %p66
      %p488 = pneg %p63
      %p489 = scmp.lt.s32.totalorder %s24, 1
      %s490 = scalar_select %p489, %s24, 1
      %s491 = scalar_lea.vmem %s2, %s490
      %p492 = pneg %p92
      %p493 = pneg %p89
      %p494 = scmp.lt.s32.totalorder %s24, 1
      %s495 = scalar_select %p494, %s24, 1
      %s496 = smul.addr %s495, 4
      %s497 = smul.addr %s496, 8
      %s498 = scalar_lea.vmem %s3, %s497
      %p499 = pneg %p118
      %p500 = pneg %p115
      %p501 = scmp.lt.s32.totalorder %s24, 1
      %s502 = scalar_select %p501, %s24, 1
      %s503 = scalar_lea.vmem %s4, %s502
      %p504 = pneg %p144
      %p505 = pneg %p141
      %p506 = scmp.lt.s32.totalorder %s24, 1
      %s507 = scalar_select %p506, %s24, 1
      %s508 = smul.addr %s507, 4
      %s509 = smul.addr %s508, 8
      %s510 = scalar_lea.vmem %s5, %s509
      %p511 = pneg %p170
      %p512 = pneg %p167
      %p513 = scmp.lt.s32.totalorder %s24, 1
      %s514 = scalar_select %p513, %s24, 1
      %s515 = scalar_lea.vmem %s6, %s514
      %p516 = pneg %p196
      %p517 = pneg %p193
      %p518 = scmp.lt.s32.totalorder %s24, 1
      %s519 = scalar_select %p518, %s24, 1
      %s520 = scalar_lea.vmem %s7, %s519
      %p521 = pneg %p222
      %p522 = pneg %p219
      %p523 = scmp.lt.s32.totalorder %s24, 1
      %s524 = scalar_select %p523, %s24, 1
      %s525 = scalar_lea.vmem %s8, %s524
      %p526 = pneg %p248
      %p527 = pneg %p245
      %p528 = scmp.lt.s32.totalorder %s24, 1
      %s529 = scalar_select %p528, %s24, 1
      %s530 = smul.addr %s529, 4
      %s531 = smul.addr %s530, 8
      %s532 = scalar_lea.vmem %s9, %s531
      %p533 = pneg %p274
      %p534 = pneg %p271
      %p535 = scmp.lt.s32.totalorder %s24, 1
      %s536 = scalar_select %p535, %s24, 1
      %s537 = scalar_lea.vmem %s10, %s536
      %p538 = pneg %p300
      %p539 = pneg %p297
      %p540 = scmp.lt.s32.totalorder %s24, 1
      %s541 = scalar_select %p540, %s24, 1
      %s542 = smul.addr %s541, 12
      %s543 = smul.addr %s542, 8
      %s544 = scalar_lea.vmem %s11, %s543
      %p545 = pneg %p326
      %p546 = pneg %p323
      %p547 = scmp.lt.s32.totalorder %s24, 1
      %s548 = scalar_select %p547, %s24, 1
      %s549 = scalar_lea.vmem %s12, %s548
      %p550 = pneg %p352
      %p551 = pneg %p349
      %p552 = pneg %p373
      %p553 = pneg %p370
      %p554 = scmp.lt.s32.totalorder %s24, 1
      %s555 = scalar_select %p554, %s24, 1
      %s556 = scalar_lea.vmem %s1, %s555
      %p557 = scmp.lt.s32.totalorder %s24, 1
      %s558 = scalar_select %p557, %s24, 1
      %s559 = scalar_lea.vmem %s2, %s558
      %p560 = scmp.lt.s32.totalorder %s24, 1
      %s561 = scalar_select %p560, %s24, 1
      %s562 = smul.addr %s561, 4
      %s563 = smul.addr %s562, 8
      %s564 = scalar_lea.vmem %s3, %s563
      %p565 = scmp.lt.s32.totalorder %s24, 1
      %s566 = scalar_select %p565, %s24, 1
      %s567 = scalar_lea.vmem %s4, %s566
      %p568 = scmp.lt.s32.totalorder %s24, 1
      %s569 = scalar_select %p568, %s24, 1
      %s570 = smul.addr %s569, 4
      %s571 = smul.addr %s570, 8
      %s572 = scalar_lea.vmem %s5, %s571
      %p573 = scmp.lt.s32.totalorder %s24, 1
      %s574 = scalar_select %p573, %s24, 1
      %s575 = scalar_lea.vmem %s6, %s574
      %p576 = scmp.lt.s32.totalorder %s24, 1
      %s577 = scalar_select %p576, %s24, 1
      %s578 = scalar_lea.vmem %s7, %s577
      %p579 = scmp.lt.s32.totalorder %s24, 1
      %s580 = scalar_select %p579, %s24, 1
      %s581 = scalar_lea.vmem %s8, %s580
      %p582 = scmp.lt.s32.totalorder %s24, 1
      %s583 = scalar_select %p582, %s24, 1
      %s584 = smul.addr %s583, 4
      %s585 = smul.addr %s584, 8
      %s586 = scalar_lea.vmem %s9, %s585
      %p587 = scmp.lt.s32.totalorder %s24, 1
      %s588 = scalar_select %p587, %s24, 1
      %s589 = scalar_lea.vmem %s10, %s588
      %p590 = scmp.lt.s32.totalorder %s24, 1
      %s591 = scalar_select %p590, %s24, 1
      %s592 = smul.addr %s591, 12
      %s593 = smul.addr %s592, 8
      %s594 = scalar_lea.vmem %s11, %s593
      %p595 = scmp.lt.s32.totalorder %s24, 1
      %s596 = scalar_select %p595, %s24, 1
      %s597 = scalar_lea.vmem %s12, %s596
      %p598 = scmp.eq.s32.totalorder %s24, 0
      // Predicated region
      $region73: #{transformer_forward.1} parent=71 // pred_check
        %p599 = pneg %p598
      $region74: #{transformer_forward.1} parent=71 // pred_check_branch
        %601 = sbr.rel (%p599) target = $region76
      $region75: #{transformer_forward.1} parent=71 // pred_region
        %v602 = vld [vmem:[%s0] sm:$0xff]
        %v603 = vld [vmem:[%s0 + $0x8] sm:$0xff]
        %vm604 = vcmask 261120
        %605 = vst.msk [vmem:[#allocation2] sm:$0xff] %vm604, %v602
        %606 = vst.msk [vmem:[#allocation2 + $0x8] sm:$0xff] %vm604, %v603
      $region76: #{transformer_forward.1} parent=71 // pred_fallthru
        _
      %v607 = vld [vmem:[#allocation2] sm:$0xff]
      %v608 = vld [vmem:[#allocation2 + $0x8] sm:$0xff]
      %v609 = vld [vmem:[%s556] sm:$0x1]
      %v610 = vld [vmem:[%s559] sm:$0x1]
      %vm611 = vcmask 261120
      %v612 = vsel %vm611, %v607, 0.0
      %613 = vadd.xlane.f32.xlu0 %v612
      %v614 = vpop.xlane.xlu0 %613
      %v615 = vsel %vm611, %v608, 0.0
      %616 = vadd.xlane.f32.xlu0 %v615
      %v617 = vpop.xlane.xlu0 %616
      %v618 = vrcp.pop 32.0
      %v619 = vmul.f32 %v614, %v618
      %v620 = vmul.f32 %v617, %v618
      %v621 = vsub.f32 %v607, %v619
      %v622 = vsub.f32 %v608, %v620
      %v623 = vmul.f32 %v621, %v621
      %v624 = vmul.f32 %v622, %v622
      %v625 = vsel %vm611, %v623, 0.0
      %626 = vadd.xlane.f32.xlu0 %v625
      %v627 = vpop.xlane.xlu0 %626
      %v628 = vsel %vm611, %v624, 0.0
      %629 = vadd.xlane.f32.xlu0 %v628
      %v630 = vpop.xlane.xlu0 %629
      %v631 = vmul.f32 %v627, %v618
      %v632 = vmul.f32 %v630, %v618
      %v633 = vadd.f32 %v631, 1e-05
      %v634 = vadd.f32 %v632, 1e-05
      %v635 = vrsqrt.pop %v633
      %v636 = vrsqrt.pop %v634
      %v637 = vmul.f32 %v621, %v635
      %v638 = vmul.f32 %v622, %v636
      %v640 = vlaneseq
      %v641 = vshrl.u32 %v640, 7
      %v642 = vsub.s32 0, %v641
      %v643 = vrot.slane %v609, %v642
      %v645 = vmul.f32 %v637, %v643
      %v646 = vmul.f32 %v638, %v643
      %v648 = vlaneseq
      %v649 = vshrl.u32 %v648, 7
      %v650 = vsub.s32 0, %v649
      %v651 = vrot.slane %v610, %v650
      %v653 = vadd.f32 %v645, %v651
      %v654 = vadd.f32 %v646, %v651
      %v655 = vld [vmem:[%s564] sm:$0xff]
      %v656 = vld [vmem:[%s564 + $0x8] sm:$0xff]
      %v657 = vld [vmem:[%s564 + $0x10] sm:$0xff]
      %v658 = vld [vmem:[%s564 + $0x18] sm:$0xff]
      %v659 = vld [vmem:[%s567] sm:$0x1]
      %v661 = vlaneseq
      %v662 = vshrl.u32 %v661, 7
      %v663 = vsub.s32 0, %v662
      %v664 = vrot.slane %v659, %v663
      %v667 = vsel %vm611, %v653, 0
      %v670 = vsel %vm611, %v654, 0
      %672 = vmatprep.subr.mxu0 0.0
      %673 = vmatpush1.msra.mxu0 0.0
      %674 = vmatprep.subr.mxu0 0.0
      %675 = vmatpush1.msra.mxu0 0.0
      %676 = vmatprep.subr.mxu0 0.0
      %677 = vmatpush1.msra.mxu0 0.0
      %678 = vmatprep.subr.mxu0 0.0
      %679 = vmatpush1.msra.mxu0 0.0
      %680 = vmatprep.subr.mxu0 0.0
      %681 = vmatpush1.msra.mxu0 0.0
      %682 = vmatprep.subr.mxu0 0.0
      %683 = vmatpush1.msra.mxu0 0.0
      %684 = vmatprep.subr.mxu0 0.0
      %685 = vmatpush1.msra.mxu0 0.0
      %686 = vmatprep.subr.mxu0 0.0
      %687 = vmatpush1.msra.mxu0 0.0
      %688 = vmatprep.subr.mxu0 0.0
      %689 = vmatpush1.msra.mxu0 0.0
      %690 = vmatprep.subr.mxu0 0.0
      %691 = vmatpush1.msra.mxu0 0.0
      %692 = vmatprep.subr.mxu0 0.0
      %693 = vmatpush1.msra.mxu0 0.0
      %694 = vmatprep.subr.mxu0 0.0
      %695 = vmatpush1.msra.mxu0 0.0
      %696 = vmatprep.subr.mxu0 0.0
      %697 = vmatpush1.msra.mxu0 %v658
      %698 = vmatprep.subr.mxu0 0.0
      %699 = vmatpush1.msra.mxu0 %v657
      %700 = vmatprep.subr.mxu0 0.0
      %701 = vmatpush1.msra.mxu0 %v656
      %702 = vmatprep.subr.mxu0 0.0
      %703 = vmatpush1.msra.mxu0 %v655
      %704 = vmatprep.subr.mxu0 0.0
      %705 = vmatpush2.msra.mxu0 0.0
      %706 = vmatprep.subr.mxu0 0.0
      %707 = vmatpush2.msra.mxu0 0.0
      %708 = vmatprep.subr.mxu0 0.0
      %709 = vmatpush2.msra.mxu0 0.0
      %710 = vmatprep.subr.mxu0 0.0
      %711 = vmatpush2.msra.mxu0 0.0
      %712 = vmatprep.subr.mxu0 0.0
      %713 = vmatpush2.msra.mxu0 0.0
      %714 = vmatprep.subr.mxu0 0.0
      %715 = vmatpush2.msra.mxu0 0.0
      %716 = vmatprep.subr.mxu0 0.0
      %717 = vmatpush2.msra.mxu0 0.0
      %718 = vmatprep.subr.mxu0 0.0
      %719 = vmatpush2.msra.mxu0 0.0
      %720 = vmatprep.subr.mxu0 0.0
      %721 = vmatpush2.msra.mxu0 0.0
      %722 = vmatprep.subr.mxu0 0.0
      %723 = vmatpush2.msra.mxu0 0.0
      %724 = vmatprep.subr.mxu0 0.0
      %725 = vmatpush2.msra.mxu0 0.0
      %726 = vmatprep.subr.mxu0 0.0
      %727 = vmatpush2.msra.mxu0 0.0
      %728 = vmatprep.subr.mxu0 0.0
      %729 = vmatpush2.msra.mxu0 0.0
      %730 = vmatprep.subr.mxu0 0.0
      %731 = vmatpush2.msra.mxu0 0.0
      %732 = vmatprep.subr.mxu0 0.0
      %733 = vmatpush2.msra.mxu0 0.0
      %734 = vmatprep.subr.mxu0 0.0
      %735 = vmatpush2.msra.mxu0 0.0
      %736 = vmatprep.mubr.f32.mxu0 0.0
      %737 = vmatmul.mubr.f32.gmra.mxu0 %v667
      %v738 = vpop.f32.mrf.mxu0
      %v739 = vadd.f32 %v664, %v738
      %v740 = vpop.f32.mrf.mxu0
      %741 = vmatprep.mubr.f32.mxu0 0.0
      %742 = vmatmul.mubr.f32.gmra.mxu0 %v670
      %v743 = vpop.f32.mrf.mxu0
      %v744 = vadd.f32 %v664, %v743
      %v745 = vpop.f32.mrf.mxu0
      %746 = vdwg.mxu0
      %v747 = vmul.f32 %v739, 0.35355338
      %v748 = vmul.f32 %v744, 0.35355338
      %750 = vrot.lane.b32.xlu0 %v739, 96
      %v751 = vpop.permute.xlu0 %750
      %vm752 = vcmask 64512
      %v754 = vsel %vm752, %v747, 0
      %v756 = vsel %vm752, %v751, 0
      %758 = vmatprep.subr.mxu0 0.0
      %759 = vmatpush1.xpose.msra.mxu0 0.0
      %760 = vmatprep.subr.mxu0 0.0
      %761 = vmatpush1.xpose.msra.mxu0 0.0
      %762 = vmatprep.subr.mxu0 0.0
      %763 = vmatpush1.xpose.msra.mxu0 0.0
      %764 = vmatprep.subr.mxu0 0.0
      %765 = vmatpush1.xpose.msra.mxu0 0.0
      %766 = vmatprep.subr.mxu0 0.0
      %767 = vmatpush1.xpose.msra.mxu0 0.0
      %768 = vmatprep.subr.mxu0 0.0
      %769 = vmatpush1.xpose.msra.mxu0 0.0
      %770 = vmatprep.subr.mxu0 0.0
      %771 = vmatpush1.xpose.msra.mxu0 0.0
      %772 = vmatprep.subr.mxu0 0.0
      %773 = vmatpush1.xpose.msra.mxu0 0.0
      %774 = vmatprep.subr.mxu0 0.0
      %775 = vmatpush1.xpose.msra.mxu0 0.0
      %776 = vmatprep.subr.mxu0 0.0
      %777 = vmatpush1.xpose.msra.mxu0 0.0
      %778 = vmatprep.subr.mxu0 0.0
      %779 = vmatpush1.xpose.msra.mxu0 0.0
      %780 = vmatprep.subr.mxu0 0.0
      %781 = vmatpush1.xpose.msra.mxu0 0.0
      %782 = vmatprep.subr.mxu0 0.0
      %783 = vmatpush1.xpose.msra.mxu0 0.0
      %784 = vmatprep.subr.mxu0 0.0
      %785 = vmatpush1.xpose.msra.mxu0 0.0
      %786 = vmatprep.subr.mxu0 0.0
      %787 = vmatpush1.xpose.msra.mxu0 0.0
      %788 = vmatprep.subr.mxu0 0.0
      %789 = vmatpush1.xpose.msra.mxu0 %v756
      %790 = vmatprep.subr.mxu0 0.0
      %791 = vmatpush2.xpose.msra.mxu0 0.0
      %792 = vmatprep.subr.mxu0 0.0
      %793 = vmatpush2.xpose.msra.mxu0 0.0
      %794 = vmatprep.subr.mxu0 0.0
      %795 = vmatpush2.xpose.msra.mxu0 0.0
      %796 = vmatprep.subr.mxu0 0.0
      %797 = vmatpush2.xpose.msra.mxu0 0.0
      %798 = vmatprep.subr.mxu0 0.0
      %799 = vmatpush2.xpose.msra.mxu0 0.0
      %800 = vmatprep.subr.mxu0 0.0
      %801 = vmatpush2.xpose.msra.mxu0 0.0
      %802 = vmatprep.subr.mxu0 0.0
      %803 = vmatpush2.xpose.msra.mxu0 0.0
      %804 = vmatprep.subr.mxu0 0.0
      %805 = vmatpush2.xpose.msra.mxu0 0.0
      %806 = vmatprep.subr.mxu0 0.0
      %807 = vmatpush2.xpose.msra.mxu0 0.0
      %808 = vmatprep.subr.mxu0 0.0
      %809 = vmatpush2.xpose.msra.mxu0 0.0
      %810 = vmatprep.subr.mxu0 0.0
      %811 = vmatpush2.xpose.msra.mxu0 0.0
      %812 = vmatprep.subr.mxu0 0.0
      %813 = vmatpush2.xpose.msra.mxu0 0.0
      %814 = vmatprep.subr.mxu0 0.0
      %815 = vmatpush2.xpose.msra.mxu0 0.0
      %816 = vmatprep.subr.mxu0 0.0
      %817 = vmatpush2.xpose.msra.mxu0 0.0
      %818 = vmatprep.subr.mxu0 0.0
      %819 = vmatpush2.xpose.msra.mxu0 0.0
      %820 = vmatprep.subr.mxu0 0.0
      %821 = vmatpush2.xpose.msra.mxu0 0.0
      %822 = vmatprep.mubr.f32.mxu0 0.0
      %823 = vmatmul.mubr.f32.gmra.mxu0 %v754
      %v824 = vpop.f32.mrf.mxu0
      %v825 = vadd.f32 0.0, %v824
      %v826 = vpop.f32.mrf.mxu0
      %827 = vdwg.mxu0
      %829 = vrot.lane.b32.xlu0 %v744, 96
      %v830 = vpop.permute.xlu0 %829
      %v832 = vsel %vm752, %v748, 0
      %v834 = vsel %vm752, %v830, 0
      %836 = vmatprep.subr.mxu0 0.0
      %837 = vmatpush1.xpose.msra.mxu0 0.0
      %838 = vmatprep.subr.mxu0 0.0
      %839 = vmatpush1.xpose.msra.mxu0 0.0
      %840 = vmatprep.subr.mxu0 0.0
      %841 = vmatpush1.xpose.msra.mxu0 0.0
      %842 = vmatprep.subr.mxu0 0.0
      %843 = vmatpush1.xpose.msra.mxu0 0.0
      %844 = vmatprep.subr.mxu0 0.0
      %845 = vmatpush1.xpose.msra.mxu0 0.0
      %846 = vmatprep.subr.mxu0 0.0
      %847 = vmatpush1.xpose.msra.mxu0 0.0
      %848 = vmatprep.subr.mxu0 0.0
      %849 = vmatpush1.xpose.msra.mxu0 0.0
      %850 = vmatprep.subr.mxu0 0.0
      %851 = vmatpush1.xpose.msra.mxu0 0.0
      %852 = vmatprep.subr.mxu0 0.0
      %853 = vmatpush1.xpose.msra.mxu0 0.0
      %854 = vmatprep.subr.mxu0 0.0
      %855 = vmatpush1.xpose.msra.mxu0 0.0
      %856 = vmatprep.subr.mxu0 0.0
      %857 = vmatpush1.xpose.msra.mxu0 0.0
      %858 = vmatprep.subr.mxu0 0.0
      %859 = vmatpush1.xpose.msra.mxu0 0.0
      %860 = vmatprep.subr.mxu0 0.0
      %861 = vmatpush1.xpose.msra.mxu0 0.0
      %862 = vmatprep.subr.mxu0 0.0
      %863 = vmatpush1.xpose.msra.mxu0 0.0
      %864 = vmatprep.subr.mxu0 0.0
      %865 = vmatpush1.xpose.msra.mxu0 0.0
      %866 = vmatprep.subr.mxu0 0.0
      %867 = vmatpush1.xpose.msra.mxu0 %v834
      %868 = vmatprep.subr.mxu0 0.0
      %869 = vmatpush2.xpose.msra.mxu0 0.0
      %870 = vmatprep.subr.mxu0 0.0
      %871 = vmatpush2.xpose.msra.mxu0 0.0
      %872 = vmatprep.subr.mxu0 0.0
      %873 = vmatpush2.xpose.msra.mxu0 0.0
      %874 = vmatprep.subr.mxu0 0.0
      %875 = vmatpush2.xpose.msra.mxu0 0.0
      %876 = vmatprep.subr.mxu0 0.0
      %877 = vmatpush2.xpose.msra.mxu0 0.0
      %878 = vmatprep.subr.mxu0 0.0
      %879 = vmatpush2.xpose.msra.mxu0 0.0
      %880 = vmatprep.subr.mxu0 0.0
      %881 = vmatpush2.xpose.msra.mxu0 0.0
      %882 = vmatprep.subr.mxu0 0.0
      %883 = vmatpush2.xpose.msra.mxu0 0.0
      %884 = vmatprep.subr.mxu0 0.0
      %885 = vmatpush2.xpose.msra.mxu0 0.0
      %886 = vmatprep.subr.mxu0 0.0
      %887 = vmatpush2.xpose.msra.mxu0 0.0
      %888 = vmatprep.subr.mxu0 0.0
      %889 = vmatpush2.xpose.msra.mxu0 0.0
      %890 = vmatprep.subr.mxu0 0.0
      %891 = vmatpush2.xpose.msra.mxu0 0.0
      %892 = vmatprep.subr.mxu0 0.0
      %893 = vmatpush2.xpose.msra.mxu0 0.0
      %894 = vmatprep.subr.mxu0 0.0
      %895 = vmatpush2.xpose.msra.mxu0 0.0
      %896 = vmatprep.subr.mxu0 0.0
      %897 = vmatpush2.xpose.msra.mxu0 0.0
      %898 = vmatprep.subr.mxu0 0.0
      %899 = vmatpush2.xpose.msra.mxu0 0.0
      %900 = vmatprep.mubr.f32.mxu0 0.0
      %901 = vmatmul.mubr.f32.gmra.mxu0 %v832
      %v902 = vpop.f32.mrf.mxu0
      %v903 = vadd.f32 0.0, %v902
      %v904 = vpop.f32.mrf.mxu0
      %905 = vdwg.mxu0
      %v906 = vsel %vm752, %v825, -inf
      %907 = vmax.xlane.f32.xlu0 %v906
      %v908 = vpop.xlane.xlu0 %907
      %v909 = vsel %vm752, %v903, -inf
      %910 = vmax.xlane.f32.xlu0 %v909
      %v911 = vpop.xlane.xlu0 %910
      %v912 = vsub.f32 %v825, %v908
      %v913 = vsub.f32 %v903, %v911
      %v914 = vmul.f32 %v912, 1.442695
      %v915 = vpow.pop %v914
      %v916 = vmul.f32 %v913, 1.442695
      %v917 = vpow.pop %v916
      %v918 = vsel %vm752, %v915, 0.0
      %919 = vadd.xlane.f32.xlu0 %v918
      %v920 = vpop.xlane.xlu0 %919
      %v921 = vsel %vm752, %v917, 0.0
      %922 = vadd.xlane.f32.xlu0 %v921
      %v923 = vpop.xlane.xlu0 %922
      %v924 = vrcp.pop %v920
      %v925 = vrcp.pop %v923
      %v926 = vmul.f32 %v915, %v924
      %v927 = vmul.f32 %v917, %v925
      %928 = vrot.lane.b32.xlu0 %v739, 64
      %v929 = vpop.permute.xlu0 %928
      %v932 = vsel %vm752, %v926, 0
      %934 = vmatprep.subr.mxu0 0.0
      %935 = vmatpush1.msra.mxu0 0.0
      %936 = vmatprep.subr.mxu0 0.0
      %937 = vmatpush1.msra.mxu0 0.0
      %938 = vmatprep.subr.mxu0 0.0
      %939 = vmatpush1.msra.mxu0 0.0
      %940 = vmatprep.subr.mxu0 0.0
      %941 = vmatpush1.msra.mxu0 0.0
      %942 = vmatprep.subr.mxu0 0.0
      %943 = vmatpush1.msra.mxu0 0.0
      %944 = vmatprep.subr.mxu0 0.0
      %945 = vmatpush1.msra.mxu0 0.0
      %946 = vmatprep.subr.mxu0 0.0
      %947 = vmatpush1.msra.mxu0 0.0
      %948 = vmatprep.subr.mxu0 0.0
      %949 = vmatpush1.msra.mxu0 0.0
      %950 = vmatprep.subr.mxu0 0.0
      %951 = vmatpush1.msra.mxu0 0.0
      %952 = vmatprep.subr.mxu0 0.0
      %953 = vmatpush1.msra.mxu0 0.0
      %954 = vmatprep.subr.mxu0 0.0
      %955 = vmatpush1.msra.mxu0 0.0
      %956 = vmatprep.subr.mxu0 0.0
      %957 = vmatpush1.msra.mxu0 0.0
      %958 = vmatprep.subr.mxu0 0.0
      %959 = vmatpush1.msra.mxu0 0.0
      %960 = vmatprep.subr.mxu0 0.0
      %961 = vmatpush1.msra.mxu0 0.0
      %962 = vmatprep.subr.mxu0 0.0
      %963 = vmatpush1.msra.mxu0 0.0
      %964 = vmatprep.subr.mxu0 0.0
      %965 = vmatpush1.msra.mxu0 %v929
      %966 = vmatprep.subr.mxu0 0.0
      %967 = vmatpush2.msra.mxu0 0.0
      %968 = vmatprep.subr.mxu0 0.0
      %969 = vmatpush2.msra.mxu0 0.0
      %970 = vmatprep.subr.mxu0 0.0
      %971 = vmatpush2.msra.mxu0 0.0
      %972 = vmatprep.subr.mxu0 0.0
      %973 = vmatpush2.msra.mxu0 0.0
      %974 = vmatprep.subr.mxu0 0.0
      %975 = vmatpush2.msra.mxu0 0.0
      %976 = vmatprep.subr.mxu0 0.0
      %977 = vmatpush2.msra.mxu0 0.0
      %978 = vmatprep.subr.mxu0 0.0
      %979 = vmatpush2.msra.mxu0 0.0
      %980 = vmatprep.subr.mxu0 0.0
      %981 = vmatpush2.msra.mxu0 0.0
      %982 = vmatprep.subr.mxu0 0.0
      %983 = vmatpush2.msra.mxu0 0.0
      %984 = vmatprep.subr.mxu0 0.0
      %985 = vmatpush2.msra.mxu0 0.0
      %986 = vmatprep.subr.mxu0 0.0
      %987 = vmatpush2.msra.mxu0 0.0
      %988 = vmatprep.subr.mxu0 0.0
      %989 = vmatpush2.msra.mxu0 0.0
      %990 = vmatprep.subr.mxu0 0.0
      %991 = vmatpush2.msra.mxu0 0.0
      %992 = vmatprep.subr.mxu0 0.0
      %993 = vmatpush2.msra.mxu0 0.0
      %994 = vmatprep.subr.mxu0 0.0
      %995 = vmatpush2.msra.mxu0 0.0
      %996 = vmatprep.subr.mxu0 0.0
      %997 = vmatpush2.msra.mxu0 0.0
      %998 = vmatprep.mubr.f32.mxu0 0.0
      %999 = vmatmul.mubr.f32.gmra.mxu0 %v932
      %v1000 = vpop.f32.mrf.mxu0
      %v1001 = vadd.f32 0.0, %v1000
      %v1002 = vpop.f32.mrf.mxu0
      %1003 = vdwg.mxu0
      %1004 = vrot.lane.b32.xlu0 %v744, 64
      %v1005 = vpop.permute.xlu0 %1004
      %v1008 = vsel %vm752, %v927, 0
      %1010 = vmatprep.subr.mxu0 0.0
      %1011 = vmatpush1.msra.mxu0 0.0
      %1012 = vmatprep.subr.mxu0 0.0
      %1013 = vmatpush1.msra.mxu0 0.0
      %1014 = vmatprep.subr.mxu0 0.0
      %1015 = vmatpush1.msra.mxu0 0.0
      %1016 = vmatprep.subr.mxu0 0.0
      %1017 = vmatpush1.msra.mxu0 0.0
      %1018 = vmatprep.subr.mxu0 0.0
      %1019 = vmatpush1.msra.mxu0 0.0
      %1020 = vmatprep.subr.mxu0 0.0
      %1021 = vmatpush1.msra.mxu0 0.0
      %1022 = vmatprep.subr.mxu0 0.0
      %1023 = vmatpush1.msra.mxu0 0.0
      %1024 = vmatprep.subr.mxu0 0.0
      %1025 = vmatpush1.msra.mxu0 0.0
      %1026 = vmatprep.subr.mxu0 0.0
      %1027 = vmatpush1.msra.mxu0 0.0
      %1028 = vmatprep.subr.mxu0 0.0
      %1029 = vmatpush1.msra.mxu0 0.0
      %1030 = vmatprep.subr.mxu0 0.0
      %1031 = vmatpush1.msra.mxu0 0.0
      %1032 = vmatprep.subr.mxu0 0.0
      %1033 = vmatpush1.msra.mxu0 0.0
      %1034 = vmatprep.subr.mxu0 0.0
      %1035 = vmatpush1.msra.mxu0 0.0
      %1036 = vmatprep.subr.mxu0 0.0
      %1037 = vmatpush1.msra.mxu0 0.0
      %1038 = vmatprep.subr.mxu0 0.0
      %1039 = vmatpush1.msra.mxu0 0.0
      %1040 = vmatprep.subr.mxu0 0.0
      %1041 = vmatpush1.msra.mxu0 %v1005
      %1042 = vmatprep.subr.mxu0 0.0
      %1043 = vmatpush2.msra.mxu0 0.0
      %1044 = vmatprep.subr.mxu0 0.0
      %1045 = vmatpush2.msra.mxu0 0.0
      %1046 = vmatprep.subr.mxu0 0.0
      %1047 = vmatpush2.msra.mxu0 0.0
      %1048 = vmatprep.subr.mxu0 0.0
      %1049 = vmatpush2.msra.mxu0 0.0
      %1050 = vmatprep.subr.mxu0 0.0
      %1051 = vmatpush2.msra.mxu0 0.0
      %1052 = vmatprep.subr.mxu0 0.0
      %1053 = vmatpush2.msra.mxu0 0.0
      %1054 = vmatprep.subr.mxu0 0.0
      %1055 = vmatpush2.msra.mxu0 0.0
      %1056 = vmatprep.subr.mxu0 0.0
      %1057 = vmatpush2.msra.mxu0 0.0
      %1058 = vmatprep.subr.mxu0 0.0
      %1059 = vmatpush2.msra.mxu0 0.0
      %1060 = vmatprep.subr.mxu0 0.0
      %1061 = vmatpush2.msra.mxu0 0.0
      %1062 = vmatprep.subr.mxu0 0.0
      %1063 = vmatpush2.msra.mxu0 0.0
      %1064 = vmatprep.subr.mxu0 0.0
      %1065 = vmatpush2.msra.mxu0 0.0
      %1066 = vmatprep.subr.mxu0 0.0
      %1067 = vmatpush2.msra.mxu0 0.0
      %1068 = vmatprep.subr.mxu0 0.0
      %1069 = vmatpush2.msra.mxu0 0.0
      %1070 = vmatprep.subr.mxu0 0.0
      %1071 = vmatpush2.msra.mxu0 0.0
      %1072 = vmatprep.subr.mxu0 0.0
      %1073 = vmatpush2.msra.mxu0 0.0
      %1074 = vmatprep.mubr.f32.mxu0 0.0
      %1075 = vmatmul.mubr.f32.gmra.mxu0 %v1008
      %v1076 = vpop.f32.mrf.mxu0
      %v1077 = vadd.f32 0.0, %v1076
      %v1078 = vpop.f32.mrf.mxu0
      %1079 = vdwg.mxu0
      %1080 = vrot.lane.b32.xlu0 %v747, 120
      %v1081 = vpop.permute.xlu0 %1080
      %1082 = vrot.lane.b32.xlu0 %v739, 88
      %v1083 = vpop.permute.xlu0 %1082
      %v1084 = vsel %vm752, %v1081, 0
      %v1086 = vsel %vm752, %v1083, 0
      %1088 = vmatprep.subr.mxu0 0.0
      %1089 = vmatpush1.xpose.msra.mxu0 0.0
      %1090 = vmatprep.subr.mxu0 0.0
      %1091 = vmatpush1.xpose.msra.mxu0 0.0
      %1092 = vmatprep.subr.mxu0 0.0
      %1093 = vmatpush1.xpose.msra.mxu0 0.0
      %1094 = vmatprep.subr.mxu0 0.0
      %1095 = vmatpush1.xpose.msra.mxu0 0.0
      %1096 = vmatprep.subr.mxu0 0.0
      %1097 = vmatpush1.xpose.msra.mxu0 0.0
      %1098 = vmatprep.subr.mxu0 0.0
      %1099 = vmatpush1.xpose.msra.mxu0 0.0
      %1100 = vmatprep.subr.mxu0 0.0
      %1101 = vmatpush1.xpose.msra.mxu0 0.0
      %1102 = vmatprep.subr.mxu0 0.0
      %1103 = vmatpush1.xpose.msra.mxu0 0.0
      %1104 = vmatprep.subr.mxu0 0.0
      %1105 = vmatpush1.xpose.msra.mxu0 0.0
      %1106 = vmatprep.subr.mxu0 0.0
      %1107 = vmatpush1.xpose.msra.mxu0 0.0
      %1108 = vmatprep.subr.mxu0 0.0
      %1109 = vmatpush1.xpose.msra.mxu0 0.0
      %1110 = vmatprep.subr.mxu0 0.0
      %1111 = vmatpush1.xpose.msra.mxu0 0.0
      %1112 = vmatprep.subr.mxu0 0.0
      %1113 = vmatpush1.xpose.msra.mxu0 0.0
      %1114 = vmatprep.subr.mxu0 0.0
      %1115 = vmatpush1.xpose.msra.mxu0 0.0
      %1116 = vmatprep.subr.mxu0 0.0
      %1117 = vmatpush1.xpose.msra.mxu0 0.0
      %1118 = vmatprep.subr.mxu0 0.0
      %1119 = vmatpush1.xpose.msra.mxu0 %v1086
      %1120 = vmatprep.subr.mxu0 0.0
      %1121 = vmatpush2.xpose.msra.mxu0 0.0
      %1122 = vmatprep.subr.mxu0 0.0
      %1123 = vmatpush2.xpose.msra.mxu0 0.0
      %1124 = vmatprep.subr.mxu0 0.0
      %1125 = vmatpush2.xpose.msra.mxu0 0.0
      %1126 = vmatprep.subr.mxu0 0.0
      %1127 = vmatpush2.xpose.msra.mxu0 0.0
      %1128 = vmatprep.subr.mxu0 0.0
      %1129 = vmatpush2.xpose.msra.mxu0 0.0
      %1130 = vmatprep.subr.mxu0 0.0
      %1131 = vmatpush2.xpose.msra.mxu0 0.0
      %1132 = vmatprep.subr.mxu0 0.0
      %1133 = vmatpush2.xpose.msra.mxu0 0.0
      %1134 = vmatprep.subr.mxu0 0.0
      %1135 = vmatpush2.xpose.msra.mxu0 0.0
      %1136 = vmatprep.subr.mxu0 0.0
      %1137 = vmatpush2.xpose.msra.mxu0 0.0
      %1138 = vmatprep.subr.mxu0 0.0
      %1139 = vmatpush2.xpose.msra.mxu0 0.0
      %1140 = vmatprep.subr.mxu0 0.0
      %1141 = vmatpush2.xpose.msra.mxu0 0.0
      %1142 = vmatprep.subr.mxu0 0.0
      %1143 = vmatpush2.xpose.msra.mxu0 0.0
      %1144 = vmatprep.subr.mxu0 0.0
      %1145 = vmatpush2.xpose.msra.mxu0 0.0
      %1146 = vmatprep.subr.mxu0 0.0
      %1147 = vmatpush2.xpose.msra.mxu0 0.0
      %1148 = vmatprep.subr.mxu0 0.0
      %1149 = vmatpush2.xpose.msra.mxu0 0.0
      %1150 = vmatprep.subr.mxu0 0.0
      %1151 = vmatpush2.xpose.msra.mxu0 0.0
      %1152 = vmatprep.mubr.f32.mxu0 0.0
      %1153 = vmatmul.mubr.f32.gmra.mxu0 %v1084
      %v1154 = vpop.f32.mrf.mxu0
      %v1155 = vadd.f32 0.0, %v1154
      %v1156 = vpop.f32.mrf.mxu0
      %1157 = vdwg.mxu0
      %1158 = vrot.lane.b32.xlu0 %v748, 120
      %v1159 = vpop.permute.xlu0 %1158
      %1160 = vrot.lane.b32.xlu0 %v744, 88
      %v1161 = vpop.permute.xlu0 %1160
      %v1162 = vsel %vm752, %v1159, 0
      %v1164 = vsel %vm752, %v1161, 0
      %1166 = vmatprep.subr.mxu0 0.0
      %1167 = vmatpush1.xpose.msra.mxu0 0.0
      %1168 = vmatprep.subr.mxu0 0.0
      %1169 = vmatpush1.xpose.msra.mxu0 0.0
      %1170 = vmatprep.subr.mxu0 0.0
      %1171 = vmatpush1.xpose.msra.mxu0 0.0
      %1172 = vmatprep.subr.mxu0 0.0
      %1173 = vmatpush1.xpose.msra.mxu0 0.0
      %1174 = vmatprep.subr.mxu0 0.0
      %1175 = vmatpush1.xpose.msra.mxu0 0.0
      %1176 = vmatprep.subr.mxu0 0.0
      %1177 = vmatpush1.xpose.msra.mxu0 0.0
      %1178 = vmatprep.subr.mxu0 0.0
      %1179 = vmatpush1.xpose.msra.mxu0 0.0
      %1180 = vmatprep.subr.mxu0 0.0
      %1181 = vmatpush1.xpose.msra.mxu0 0.0
      %1182 = vmatprep.subr.mxu0 0.0
      %1183 = vmatpush1.xpose.msra.mxu0 0.0
      %1184 = vmatprep.subr.mxu0 0.0
      %1185 = vmatpush1.xpose.msra.mxu0 0.0
      %1186 = vmatprep.subr.mxu0 0.0
      %1187 = vmatpush1.xpose.msra.mxu0 0.0
      %1188 = vmatprep.subr.mxu0 0.0
      %1189 = vmatpush1.xpose.msra.mxu0 0.0
      %1190 = vmatprep.subr.mxu0 0.0
      %1191 = vmatpush1.xpose.msra.mxu0 0.0
      %1192 = vmatprep.subr.mxu0 0.0
      %1193 = vmatpush1.xpose.msra.mxu0 0.0
      %1194 = vmatprep.subr.mxu0 0.0
      %1195 = vmatpush1.xpose.msra.mxu0 0.0
      %1196 = vmatprep.subr.mxu0 0.0
      %1197 = vmatpush1.xpose.msra.mxu0 %v1164
      %1198 = vmatprep.subr.mxu0 0.0
      %1199 = vmatpush2.xpose.msra.mxu0 0.0
      %1200 = vmatprep.subr.mxu0 0.0
      %1201 = vmatpush2.xpose.msra.mxu0 0.0
      %1202 = vmatprep.subr.mxu0 0.0
      %1203 = vmatpush2.xpose.msra.mxu0 0.0
      %1204 = vmatprep.subr.mxu0 0.0
      %1205 = vmatpush2.xpose.msra.mxu0 0.0
      %1206 = vmatprep.subr.mxu0 0.0
      %1207 = vmatpush2.xpose.msra.mxu0 0.0
      %1208 = vmatprep.subr.mxu0 0.0
      %1209 = vmatpush2.xpose.msra.mxu0 0.0
      %1210 = vmatprep.subr.mxu0 0.0
      %1211 = vmatpush2.xpose.msra.mxu0 0.0
      %1212 = vmatprep.subr.mxu0 0.0
      %1213 = vmatpush2.xpose.msra.mxu0 0.0
      %1214 = vmatprep.subr.mxu0 0.0
      %1215 = vmatpush2.xpose.msra.mxu0 0.0
      %1216 = vmatprep.subr.mxu0 0.0
      %1217 = vmatpush2.xpose.msra.mxu0 0.0
      %1218 = vmatprep.subr.mxu0 0.0
      %1219 = vmatpush2.xpose.msra.mxu0 0.0
      %1220 = vmatprep.subr.mxu0 0.0
      %1221 = vmatpush2.xpose.msra.mxu0 0.0
      %1222 = vmatprep.subr.mxu0 0.0
      %1223 = vmatpush2.xpose.msra.mxu0 0.0
      %1224 = vmatprep.subr.mxu0 0.0
      %1225 = vmatpush2.xpose.msra.mxu0 0.0
      %1226 = vmatprep.subr.mxu0 0.0
      %1227 = vmatpush2.xpose.msra.mxu0 0.0
      %1228 = vmatprep.subr.mxu0 0.0
      %1229 = vmatpush2.xpose.msra.mxu0 0.0
      %1230 = vmatprep.mubr.f32.mxu0 0.0
      %1231 = vmatmul.mubr.f32.gmra.mxu0 %v1162
      %v1232 = vpop.f32.mrf.mxu0
      %v1233 = vadd.f32 0.0, %v1232
      %v1234 = vpop.f32.mrf.mxu0
      %1235 = vdwg.mxu0
      %v1236 = vsel %vm752, %v1155, -inf
      %1237 = vmax.xlane.f32.xlu0 %v1236
      %v1238 = vpop.xlane.xlu0 %1237
      %v1239 = vsel %vm752, %v1233, -inf
      %1240 = vmax.xlane.f32.xlu0 %v1239
      %v1241 = vpop.xlane.xlu0 %1240
      %v1242 = vsub.f32 %v1155, %v1238
      %v1243 = vsub.f32 %v1233, %v1241
      %v1244 = vmul.f32 %v1242, 1.442695
      %v1245 = vpow.pop %v1244
      %v1246 = vmul.f32 %v1243, 1.442695
      %v1247 = vpow.pop %v1246
      %v1248 = vsel %vm752, %v1245, 0.0
      %1249 = vadd.xlane.f32.xlu0 %v1248
      %v1250 = vpop.xlane.xlu0 %1249
      %v1251 = vsel %vm752, %v1247, 0.0
      %1252 = vadd.xlane.f32.xlu0 %v1251
      %v1253 = vpop.xlane.xlu0 %1252
      %v1254 = vrcp.pop %v1250
      %v1255 = vrcp.pop %v1253
      %v1256 = vmul.f32 %v1245, %v1254
      %v1257 = vmul.f32 %v1247, %v1255
      %1258 = vrot.lane.b32.xlu0 %v739, 56
      %v1259 = vpop.permute.xlu0 %1258
      %v1262 = vsel %vm752, %v1256, 0
      %1264 = vmatprep.subr.mxu0 0.0
      %1265 = vmatpush1.msra.mxu0 0.0
      %1266 = vmatprep.subr.mxu0 0.0
      %1267 = vmatpush1.msra.mxu0 0.0
      %1268 = vmatprep.subr.mxu0 0.0
      %1269 = vmatpush1.msra.mxu0 0.0
      %1270 = vmatprep.subr.mxu0 0.0
      %1271 = vmatpush1.msra.mxu0 0.0
      %1272 = vmatprep.subr.mxu0 0.0
      %1273 = vmatpush1.msra.mxu0 0.0
      %1274 = vmatprep.subr.mxu0 0.0
      %1275 = vmatpush1.msra.mxu0 0.0
      %1276 = vmatprep.subr.mxu0 0.0
      %1277 = vmatpush1.msra.mxu0 0.0
      %1278 = vmatprep.subr.mxu0 0.0
      %1279 = vmatpush1.msra.mxu0 0.0
      %1280 = vmatprep.subr.mxu0 0.0
      %1281 = vmatpush1.msra.mxu0 0.0
      %1282 = vmatprep.subr.mxu0 0.0
      %1283 = vmatpush1.msra.mxu0 0.0
      %1284 = vmatprep.subr.mxu0 0.0
      %1285 = vmatpush1.msra.mxu0 0.0
      %1286 = vmatprep.subr.mxu0 0.0
      %1287 = vmatpush1.msra.mxu0 0.0
      %1288 = vmatprep.subr.mxu0 0.0
      %1289 = vmatpush1.msra.mxu0 0.0
      %1290 = vmatprep.subr.mxu0 0.0
      %1291 = vmatpush1.msra.mxu0 0.0
      %1292 = vmatprep.subr.mxu0 0.0
      %1293 = vmatpush1.msra.mxu0 0.0
      %1294 = vmatprep.subr.mxu0 0.0
      %1295 = vmatpush1.msra.mxu0 %v1259
      %1296 = vmatprep.subr.mxu0 0.0
      %1297 = vmatpush2.msra.mxu0 0.0
      %1298 = vmatprep.subr.mxu0 0.0
      %1299 = vmatpush2.msra.mxu0 0.0
      %1300 = vmatprep.subr.mxu0 0.0
      %1301 = vmatpush2.msra.mxu0 0.0
      %1302 = vmatprep.subr.mxu0 0.0
      %1303 = vmatpush2.msra.mxu0 0.0
      %1304 = vmatprep.subr.mxu0 0.0
      %1305 = vmatpush2.msra.mxu0 0.0
      %1306 = vmatprep.subr.mxu0 0.0
      %1307 = vmatpush2.msra.mxu0 0.0
      %1308 = vmatprep.subr.mxu0 0.0
      %1309 = vmatpush2.msra.mxu0 0.0
      %1310 = vmatprep.subr.mxu0 0.0
      %1311 = vmatpush2.msra.mxu0 0.0
      %1312 = vmatprep.subr.mxu0 0.0
      %1313 = vmatpush2.msra.mxu0 0.0
      %1314 = vmatprep.subr.mxu0 0.0
      %1315 = vmatpush2.msra.mxu0 0.0
      %1316 = vmatprep.subr.mxu0 0.0
      %1317 = vmatpush2.msra.mxu0 0.0
      %1318 = vmatprep.subr.mxu0 0.0
      %1319 = vmatpush2.msra.mxu0 0.0
      %1320 = vmatprep.subr.mxu0 0.0
      %1321 = vmatpush2.msra.mxu0 0.0
      %1322 = vmatprep.subr.mxu0 0.0
      %1323 = vmatpush2.msra.mxu0 0.0
      %1324 = vmatprep.subr.mxu0 0.0
      %1325 = vmatpush2.msra.mxu0 0.0
      %1326 = vmatprep.subr.mxu0 0.0
      %1327 = vmatpush2.msra.mxu0 0.0
      %1328 = vmatprep.mubr.f32.mxu0 0.0
      %1329 = vmatmul.mubr.f32.gmra.mxu0 %v1262
      %v1330 = vpop.f32.mrf.mxu0
      %v1331 = vadd.f32 0.0, %v1330
      %v1332 = vpop.f32.mrf.mxu0
      %1333 = vdwg.mxu0
      %1334 = vrot.lane.b32.xlu0 %v744, 56
      %v1335 = vpop.permute.xlu0 %1334
      %v1338 = vsel %vm752, %v1257, 0
      %1340 = vmatprep.subr.mxu0 0.0
      %1341 = vmatpush1.msra.mxu0 0.0
      %1342 = vmatprep.subr.mxu0 0.0
      %1343 = vmatpush1.msra.mxu0 0.0
      %1344 = vmatprep.subr.mxu0 0.0
      %1345 = vmatpush1.msra.mxu0 0.0
      %1346 = vmatprep.subr.mxu0 0.0
      %1347 = vmatpush1.msra.mxu0 0.0
      %1348 = vmatprep.subr.mxu0 0.0
      %1349 = vmatpush1.msra.mxu0 0.0
      %1350 = vmatprep.subr.mxu0 0.0
      %1351 = vmatpush1.msra.mxu0 0.0
      %1352 = vmatprep.subr.mxu0 0.0
      %1353 = vmatpush1.msra.mxu0 0.0
      %1354 = vmatprep.subr.mxu0 0.0
      %1355 = vmatpush1.msra.mxu0 0.0
      %1356 = vmatprep.subr.mxu0 0.0
      %1357 = vmatpush1.msra.mxu0 0.0
      %1358 = vmatprep.subr.mxu0 0.0
      %1359 = vmatpush1.msra.mxu0 0.0
      %1360 = vmatprep.subr.mxu0 0.0
      %1361 = vmatpush1.msra.mxu0 0.0
      %1362 = vmatprep.subr.mxu0 0.0
      %1363 = vmatpush1.msra.mxu0 0.0
      %1364 = vmatprep.subr.mxu0 0.0
      %1365 = vmatpush1.msra.mxu0 0.0
      %1366 = vmatprep.subr.mxu0 0.0
      %1367 = vmatpush1.msra.mxu0 0.0
      %1368 = vmatprep.subr.mxu0 0.0
      %1369 = vmatpush1.msra.mxu0 0.0
      %1370 = vmatprep.subr.mxu0 0.0
      %1371 = vmatpush1.msra.mxu0 %v1335
      %1372 = vmatprep.subr.mxu0 0.0
      %1373 = vmatpush2.msra.mxu0 0.0
      %1374 = vmatprep.subr.mxu0 0.0
      %1375 = vmatpush2.msra.mxu0 0.0
      %1376 = vmatprep.subr.mxu0 0.0
      %1377 = vmatpush2.msra.mxu0 0.0
      %1378 = vmatprep.subr.mxu0 0.0
      %1379 = vmatpush2.msra.mxu0 0.0
      %1380 = vmatprep.subr.mxu0 0.0
      %1381 = vmatpush2.msra.mxu0 0.0
      %1382 = vmatprep.subr.mxu0 0.0
      %1383 = vmatpush2.msra.mxu0 0.0
      %1384 = vmatprep.subr.mxu0 0.0
      %1385 = vmatpush2.msra.mxu0 0.0
      %1386 = vmatprep.subr.mxu0 0.0
      %1387 = vmatpush2.msra.mxu0 0.0
      %1388 = vmatprep.subr.mxu0 0.0
      %1389 = vmatpush2.msra.mxu0 0.0
      %1390 = vmatprep.subr.mxu0 0.0
      %1391 = vmatpush2.msra.mxu0 0.0
      %1392 = vmatprep.subr.mxu0 0.0
      %1393 = vmatpush2.msra.mxu0 0.0
      %1394 = vmatprep.subr.mxu0 0.0
      %1395 = vmatpush2.msra.mxu0 0.0
      %1396 = vmatprep.subr.mxu0 0.0
      %1397 = vmatpush2.msra.mxu0 0.0
      %1398 = vmatprep.subr.mxu0 0.0
      %1399 = vmatpush2.msra.mxu0 0.0
      %1400 = vmatprep.subr.mxu0 0.0
      %1401 = vmatpush2.msra.mxu0 0.0
      %1402 = vmatprep.subr.mxu0 0.0
      %1403 = vmatpush2.msra.mxu0 0.0
      %1404 = vmatprep.mubr.f32.mxu0 0.0
      %1405 = vmatmul.mubr.f32.gmra.mxu0 %v1338
      %v1406 = vpop.f32.mrf.mxu0
      %v1407 = vadd.f32 0.0, %v1406
      %v1408 = vpop.f32.mrf.mxu0
      %1409 = vdwg.mxu0
      %1410 = vrot.lane.b32.xlu0 %v747, 112
      %v1411 = vpop.permute.xlu0 %1410
      %1412 = vrot.lane.b32.xlu0 %v739, 80
      %v1413 = vpop.permute.xlu0 %1412
      %v1414 = vsel %vm752, %v1411, 0
      %v1416 = vsel %vm752, %v1413, 0
      %1418 = vmatprep.subr.mxu0 0.0
      %1419 = vmatpush1.xpose.msra.mxu0 0.0
      %1420 = vmatprep.subr.mxu0 0.0
      %1421 = vmatpush1.xpose.msra.mxu0 0.0
      %1422 = vmatprep.subr.mxu0 0.0
      %1423 = vmatpush1.xpose.msra.mxu0 0.0
      %1424 = vmatprep.subr.mxu0 0.0
      %1425 = vmatpush1.xpose.msra.mxu0 0.0
      %1426 = vmatprep.subr.mxu0 0.0
      %1427 = vmatpush1.xpose.msra.mxu0 0.0
      %1428 = vmatprep.subr.mxu0 0.0
      %1429 = vmatpush1.xpose.msra.mxu0 0.0
      %1430 = vmatprep.subr.mxu0 0.0
      %1431 = vmatpush1.xpose.msra.mxu0 0.0
      %1432 = vmatprep.subr.mxu0 0.0
      %1433 = vmatpush1.xpose.msra.mxu0 0.0
      %1434 = vmatprep.subr.mxu0 0.0
      %1435 = vmatpush1.xpose.msra.mxu0 0.0
      %1436 = vmatprep.subr.mxu0 0.0
      %1437 = vmatpush1.xpose.msra.mxu0 0.0
      %1438 = vmatprep.subr.mxu0 0.0
      %1439 = vmatpush1.xpose.msra.mxu0 0.0
      %1440 = vmatprep.subr.mxu0 0.0
      %1441 = vmatpush1.xpose.msra.mxu0 0.0
      %1442 = vmatprep.subr.mxu0 0.0
      %1443 = vmatpush1.xpose.msra.mxu0 0.0
      %1444 = vmatprep.subr.mxu0 0.0
      %1445 = vmatpush1.xpose.msra.mxu0 0.0
      %1446 = vmatprep.subr.mxu0 0.0
      %1447 = vmatpush1.xpose.msra.mxu0 0.0
      %1448 = vmatprep.subr.mxu0 0.0
      %1449 = vmatpush1.xpose.msra.mxu0 %v1416
      %1450 = vmatprep.subr.mxu0 0.0
      %1451 = vmatpush2.xpose.msra.mxu0 0.0
      %1452 = vmatprep.subr.mxu0 0.0
      %1453 = vmatpush2.xpose.msra.mxu0 0.0
      %1454 = vmatprep.subr.mxu0 0.0
      %1455 = vmatpush2.xpose.msra.mxu0 0.0
      %1456 = vmatprep.subr.mxu0 0.0
      %1457 = vmatpush2.xpose.msra.mxu0 0.0
      %1458 = vmatprep.subr.mxu0 0.0
      %1459 = vmatpush2.xpose.msra.mxu0 0.0
      %1460 = vmatprep.subr.mxu0 0.0
      %1461 = vmatpush2.xpose.msra.mxu0 0.0
      %1462 = vmatprep.subr.mxu0 0.0
      %1463 = vmatpush2.xpose.msra.mxu0 0.0
      %1464 = vmatprep.subr.mxu0 0.0
      %1465 = vmatpush2.xpose.msra.mxu0 0.0
      %1466 = vmatprep.subr.mxu0 0.0
      %1467 = vmatpush2.xpose.msra.mxu0 0.0
      %1468 = vmatprep.subr.mxu0 0.0
      %1469 = vmatpush2.xpose.msra.mxu0 0.0
      %1470 = vmatprep.subr.mxu0 0.0
      %1471 = vmatpush2.xpose.msra.mxu0 0.0
      %1472 = vmatprep.subr.mxu0 0.0
      %1473 = vmatpush2.xpose.msra.mxu0 0.0
      %1474 = vmatprep.subr.mxu0 0.0
      %1475 = vmatpush2.xpose.msra.mxu0 0.0
      %1476 = vmatprep.subr.mxu0 0.0
      %1477 = vmatpush2.xpose.msra.mxu0 0.0
      %1478 = vmatprep.subr.mxu0 0.0
      %1479 = vmatpush2.xpose.msra.mxu0 0.0
      %1480 = vmatprep.subr.mxu0 0.0
      %1481 = vmatpush2.xpose.msra.mxu0 0.0
      %1482 = vmatprep.mubr.f32.mxu0 0.0
      %1483 = vmatmul.mubr.f32.gmra.mxu0 %v1414
      %v1484 = vpop.f32.mrf.mxu0
      %v1485 = vadd.f32 0.0, %v1484
      %v1486 = vpop.f32.mrf.mxu0
      %1487 = vdwg.mxu0
      %1488 = vrot.lane.b32.xlu0 %v748, 112
      %v1489 = vpop.permute.xlu0 %1488
      %1490 = vrot.lane.b32.xlu0 %v744, 80
      %v1491 = vpop.permute.xlu0 %1490
      %v1492 = vsel %vm752, %v1489, 0
      %v1494 = vsel %vm752, %v1491, 0
      %1496 = vmatprep.subr.mxu0 0.0
      %1497 = vmatpush1.xpose.msra.mxu0 0.0
      %1498 = vmatprep.subr.mxu0 0.0
      %1499 = vmatpush1.xpose.msra.mxu0 0.0
      %1500 = vmatprep.subr.mxu0 0.0
      %1501 = vmatpush1.xpose.msra.mxu0 0.0
      %1502 = vmatprep.subr.mxu0 0.0
      %1503 = vmatpush1.xpose.msra.mxu0 0.0
      %1504 = vmatprep.subr.mxu0 0.0
      %1505 = vmatpush1.xpose.msra.mxu0 0.0
      %1506 = vmatprep.subr.mxu0 0.0
      %1507 = vmatpush1.xpose.msra.mxu0 0.0
      %1508 = vmatprep.subr.mxu0 0.0
      %1509 = vmatpush1.xpose.msra.mxu0 0.0
      %1510 = vmatprep.subr.mxu0 0.0
      %1511 = vmatpush1.xpose.msra.mxu0 0.0
      %1512 = vmatprep.subr.mxu0 0.0
      %1513 = vmatpush1.xpose.msra.mxu0 0.0
      %1514 = vmatprep.subr.mxu0 0.0
      %1515 = vmatpush1.xpose.msra.mxu0 0.0
      %1516 = vmatprep.subr.mxu0 0.0
      %1517 = vmatpush1.xpose.msra.mxu0 0.0
      %1518 = vmatprep.subr.mxu0 0.0
      %1519 = vmatpush1.xpose.msra.mxu0 0.0
      %1520 = vmatprep.subr.mxu0 0.0
      %1521 = vmatpush1.xpose.msra.mxu0 0.0
      %1522 = vmatprep.subr.mxu0 0.0
      %1523 = vmatpush1.xpose.msra.mxu0 0.0
      %1524 = vmatprep.subr.mxu0 0.0
      %1525 = vmatpush1.xpose.msra.mxu0 0.0
      %1526 = vmatprep.subr.mxu0 0.0
      %1527 = vmatpush1.xpose.msra.mxu0 %v1494
      %1528 = vmatprep.subr.mxu0 0.0
      %1529 = vmatpush2.xpose.msra.mxu0 0.0
      %1530 = vmatprep.subr.mxu0 0.0
      %1531 = vmatpush2.xpose.msra.mxu0 0.0
      %1532 = vmatprep.subr.mxu0 0.0
      %1533 = vmatpush2.xpose.msra.mxu0 0.0
      %1534 = vmatprep.subr.mxu0 0.0
      %1535 = vmatpush2.xpose.msra.mxu0 0.0
      %1536 = vmatprep.subr.mxu0 0.0
      %1537 = vmatpush2.xpose.msra.mxu0 0.0
      %1538 = vmatprep.subr.mxu0 0.0
      %1539 = vmatpush2.xpose.msra.mxu0 0.0
      %1540 = vmatprep.subr.mxu0 0.0
      %1541 = vmatpush2.xpose.msra.mxu0 0.0
      %1542 = vmatprep.subr.mxu0 0.0
      %1543 = vmatpush2.xpose.msra.mxu0 0.0
      %1544 = vmatprep.subr.mxu0 0.0
      %1545 = vmatpush2.xpose.msra.mxu0 0.0
      %1546 = vmatprep.subr.mxu0 0.0
      %1547 = vmatpush2.xpose.msra.mxu0 0.0
      %1548 = vmatprep.subr.mxu0 0.0
      %1549 = vmatpush2.xpose.msra.mxu0 0.0
      %1550 = vmatprep.subr.mxu0 0.0
      %1551 = vmatpush2.xpose.msra.mxu0 0.0
      %1552 = vmatprep.subr.mxu0 0.0
      %1553 = vmatpush2.xpose.msra.mxu0 0.0
      %1554 = vmatprep.subr.mxu0 0.0
      %1555 = vmatpush2.xpose.msra.mxu0 0.0
      %1556 = vmatprep.subr.mxu0 0.0
      %1557 = vmatpush2.xpose.msra.mxu0 0.0
      %1558 = vmatprep.subr.mxu0 0.0
      %1559 = vmatpush2.xpose.msra.mxu0 0.0
      %1560 = vmatprep.mubr.f32.mxu0 0.0
      %1561 = vmatmul.mubr.f32.gmra.mxu0 %v1492
      %v1562 = vpop.f32.mrf.mxu0
      %v1563 = vadd.f32 0.0, %v1562
      %v1564 = vpop.f32.mrf.mxu0
      %1565 = vdwg.mxu0
      %v1566 = vsel %vm752, %v1485, -inf
      %1567 = vmax.xlane.f32.xlu0 %v1566
      %v1568 = vpop.xlane.xlu0 %1567
      %v1569 = vsel %vm752, %v1563, -inf
      %1570 = vmax.xlane.f32.xlu0 %v1569
      %v1571 = vpop.xlane.xlu0 %1570
      %v1572 = vsub.f32 %v1485, %v1568
      %v1573 = vsub.f32 %v1563, %v1571
      %v1574 = vmul.f32 %v1572, 1.442695
      %v1575 = vpow.pop %v1574
      %v1576 = vmul.f32 %v1573, 1.442695
      %v1577 = vpow.pop %v1576
      %v1578 = vsel %vm752, %v1575, 0.0
      %1579 = vadd.xlane.f32.xlu0 %v1578
      %v1580 = vpop.xlane.xlu0 %1579
      %v1581 = vsel %vm752, %v1577, 0.0
      %1582 = vadd.xlane.f32.xlu0 %v1581
      %v1583 = vpop.xlane.xlu0 %1582
      %v1584 = vrcp.pop %v1580
      %v1585 = vrcp.pop %v1583
      %v1586 = vmul.f32 %v1575, %v1584
      %v1587 = vmul.f32 %v1577, %v1585
      %1588 = vrot.lane.b32.xlu0 %v739, 48
      %v1589 = vpop.permute.xlu0 %1588
      %v1592 = vsel %vm752, %v1586, 0
      %1594 = vmatprep.subr.mxu0 0.0
      %1595 = vmatpush1.msra.mxu0 0.0
      %1596 = vmatprep.subr.mxu0 0.0
      %1597 = vmatpush1.msra.mxu0 0.0
      %1598 = vmatprep.subr.mxu0 0.0
      %1599 = vmatpush1.msra.mxu0 0.0
      %1600 = vmatprep.subr.mxu0 0.0
      %1601 = vmatpush1.msra.mxu0 0.0
      %1602 = vmatprep.subr.mxu0 0.0
      %1603 = vmatpush1.msra.mxu0 0.0
      %1604 = vmatprep.subr.mxu0 0.0
      %1605 = vmatpush1.msra.mxu0 0.0
      %1606 = vmatprep.subr.mxu0 0.0
      %1607 = vmatpush1.msra.mxu0 0.0
      %1608 = vmatprep.subr.mxu0 0.0
      %1609 = vmatpush1.msra.mxu0 0.0
      %1610 = vmatprep.subr.mxu0 0.0
      %1611 = vmatpush1.msra.mxu0 0.0
      %1612 = vmatprep.subr.mxu0 0.0
      %1613 = vmatpush1.msra.mxu0 0.0
      %1614 = vmatprep.subr.mxu0 0.0
      %1615 = vmatpush1.msra.mxu0 0.0
      %1616 = vmatprep.subr.mxu0 0.0
      %1617 = vmatpush1.msra.mxu0 0.0
      %1618 = vmatprep.subr.mxu0 0.0
      %1619 = vmatpush1.msra.mxu0 0.0
      %1620 = vmatprep.subr.mxu0 0.0
      %1621 = vmatpush1.msra.mxu0 0.0
      %1622 = vmatprep.subr.mxu0 0.0
      %1623 = vmatpush1.msra.mxu0 0.0
      %1624 = vmatprep.subr.mxu0 0.0
      %1625 = vmatpush1.msra.mxu0 %v1589
      %1626 = vmatprep.subr.mxu0 0.0
      %1627 = vmatpush2.msra.mxu0 0.0
      %1628 = vmatprep.subr.mxu0 0.0
      %1629 = vmatpush2.msra.mxu0 0.0
      %1630 = vmatprep.subr.mxu0 0.0
      %1631 = vmatpush2.msra.mxu0 0.0
      %1632 = vmatprep.subr.mxu0 0.0
      %1633 = vmatpush2.msra.mxu0 0.0
      %1634 = vmatprep.subr.mxu0 0.0
      %1635 = vmatpush2.msra.mxu0 0.0
      %1636 = vmatprep.subr.mxu0 0.0
      %1637 = vmatpush2.msra.mxu0 0.0
      %1638 = vmatprep.subr.mxu0 0.0
      %1639 = vmatpush2.msra.mxu0 0.0
      %1640 = vmatprep.subr.mxu0 0.0
      %1641 = vmatpush2.msra.mxu0 0.0
      %1642 = vmatprep.subr.mxu0 0.0
      %1643 = vmatpush2.msra.mxu0 0.0
      %1644 = vmatprep.subr.mxu0 0.0
      %1645 = vmatpush2.msra.mxu0 0.0
      %1646 = vmatprep.subr.mxu0 0.0
      %1647 = vmatpush2.msra.mxu0 0.0
      %1648 = vmatprep.subr.mxu0 0.0
      %1649 = vmatpush2.msra.mxu0 0.0
      %1650 = vmatprep.subr.mxu0 0.0
      %1651 = vmatpush2.msra.mxu0 0.0
      %1652 = vmatprep.subr.mxu0 0.0
      %1653 = vmatpush2.msra.mxu0 0.0
      %1654 = vmatprep.subr.mxu0 0.0
      %1655 = vmatpush2.msra.mxu0 0.0
      %1656 = vmatprep.subr.mxu0 0.0
      %1657 = vmatpush2.msra.mxu0 0.0
      %1658 = vmatprep.mubr.f32.mxu0 0.0
      %1659 = vmatmul.mubr.f32.gmra.mxu0 %v1592
      %v1660 = vpop.f32.mrf.mxu0
      %v1661 = vadd.f32 0.0, %v1660
      %v1662 = vpop.f32.mrf.mxu0
      %1663 = vdwg.mxu0
      %1664 = vrot.lane.b32.xlu0 %v744, 48
      %v1665 = vpop.permute.xlu0 %1664
      %v1668 = vsel %vm752, %v1587, 0
      %1670 = vmatprep.subr.mxu0 0.0
      %1671 = vmatpush1.msra.mxu0 0.0
      %1672 = vmatprep.subr.mxu0 0.0
      %1673 = vmatpush1.msra.mxu0 0.0
      %1674 = vmatprep.subr.mxu0 0.0
      %1675 = vmatpush1.msra.mxu0 0.0
      %1676 = vmatprep.subr.mxu0 0.0
      %1677 = vmatpush1.msra.mxu0 0.0
      %1678 = vmatprep.subr.mxu0 0.0
      %1679 = vmatpush1.msra.mxu0 0.0
      %1680 = vmatprep.subr.mxu0 0.0
      %1681 = vmatpush1.msra.mxu0 0.0
      %1682 = vmatprep.subr.mxu0 0.0
      %1683 = vmatpush1.msra.mxu0 0.0
      %1684 = vmatprep.subr.mxu0 0.0
      %1685 = vmatpush1.msra.mxu0 0.0
      %1686 = vmatprep.subr.mxu0 0.0
      %1687 = vmatpush1.msra.mxu0 0.0
      %1688 = vmatprep.subr.mxu0 0.0
      %1689 = vmatpush1.msra.mxu0 0.0
      %1690 = vmatprep.subr.mxu0 0.0
      %1691 = vmatpush1.msra.mxu0 0.0
      %1692 = vmatprep.subr.mxu0 0.0
      %1693 = vmatpush1.msra.mxu0 0.0
      %1694 = vmatprep.subr.mxu0 0.0
      %1695 = vmatpush1.msra.mxu0 0.0
      %1696 = vmatprep.subr.mxu0 0.0
      %1697 = vmatpush1.msra.mxu0 0.0
      %1698 = vmatprep.subr.mxu0 0.0
      %1699 = vmatpush1.msra.mxu0 0.0
      %1700 = vmatprep.subr.mxu0 0.0
      %1701 = vmatpush1.msra.mxu0 %v1665
      %1702 = vmatprep.subr.mxu0 0.0
      %1703 = vmatpush2.msra.mxu0 0.0
      %1704 = vmatprep.subr.mxu0 0.0
      %1705 = vmatpush2.msra.mxu0 0.0
      %1706 = vmatprep.subr.mxu0 0.0
      %1707 = vmatpush2.msra.mxu0 0.0
      %1708 = vmatprep.subr.mxu0 0.0
      %1709 = vmatpush2.msra.mxu0 0.0
      %1710 = vmatprep.subr.mxu0 0.0
      %1711 = vmatpush2.msra.mxu0 0.0
      %1712 = vmatprep.subr.mxu0 0.0
      %1713 = vmatpush2.msra.mxu0 0.0
      %1714 = vmatprep.subr.mxu0 0.0
      %1715 = vmatpush2.msra.mxu0 0.0
      %1716 = vmatprep.subr.mxu0 0.0
      %1717 = vmatpush2.msra.mxu0 0.0
      %1718 = vmatprep.subr.mxu0 0.0
      %1719 = vmatpush2.msra.mxu0 0.0
      %1720 = vmatprep.subr.mxu0 0.0
      %1721 = vmatpush2.msra.mxu0 0.0
      %1722 = vmatprep.subr.mxu0 0.0
      %1723 = vmatpush2.msra.mxu0 0.0
      %1724 = vmatprep.subr.mxu0 0.0
      %1725 = vmatpush2.msra.mxu0 0.0
      %1726 = vmatprep.subr.mxu0 0.0
      %1727 = vmatpush2.msra.mxu0 0.0
      %1728 = vmatprep.subr.mxu0 0.0
      %1729 = vmatpush2.msra.mxu0 0.0
      %1730 = vmatprep.subr.mxu0 0.0
      %1731 = vmatpush2.msra.mxu0 0.0
      %1732 = vmatprep.subr.mxu0 0.0
      %1733 = vmatpush2.msra.mxu0 0.0
      %1734 = vmatprep.mubr.f32.mxu0 0.0
      %1735 = vmatmul.mubr.f32.gmra.mxu0 %v1668
      %v1736 = vpop.f32.mrf.mxu0
      %v1737 = vadd.f32 0.0, %v1736
      %v1738 = vpop.f32.mrf.mxu0
      %1739 = vdwg.mxu0
      %1740 = vrot.lane.b32.xlu0 %v747, 104
      %v1741 = vpop.permute.xlu0 %1740
      %1742 = vrot.lane.b32.xlu0 %v739, 72
      %v1743 = vpop.permute.xlu0 %1742
      %v1744 = vsel %vm752, %v1741, 0
      %v1746 = vsel %vm752, %v1743, 0
      %1748 = vmatprep.subr.mxu0 0.0
      %1749 = vmatpush1.xpose.msra.mxu0 0.0
      %1750 = vmatprep.subr.mxu0 0.0
      %1751 = vmatpush1.xpose.msra.mxu0 0.0
      %1752 = vmatprep.subr.mxu0 0.0
      %1753 = vmatpush1.xpose.msra.mxu0 0.0
      %1754 = vmatprep.subr.mxu0 0.0
      %1755 = vmatpush1.xpose.msra.mxu0 0.0
      %1756 = vmatprep.subr.mxu0 0.0
      %1757 = vmatpush1.xpose.msra.mxu0 0.0
      %1758 = vmatprep.subr.mxu0 0.0
      %1759 = vmatpush1.xpose.msra.mxu0 0.0
      %1760 = vmatprep.subr.mxu0 0.0
      %1761 = vmatpush1.xpose.msra.mxu0 0.0
      %1762 = vmatprep.subr.mxu0 0.0
      %1763 = vmatpush1.xpose.msra.mxu0 0.0
      %1764 = vmatprep.subr.mxu0 0.0
      %1765 = vmatpush1.xpose.msra.mxu0 0.0
      %1766 = vmatprep.subr.mxu0 0.0
      %1767 = vmatpush1.xpose.msra.mxu0 0.0
      %1768 = vmatprep.subr.mxu0 0.0
      %1769 = vmatpush1.xpose.msra.mxu0 0.0
      %1770 = vmatprep.subr.mxu0 0.0
      %1771 = vmatpush1.xpose.msra.mxu0 0.0
      %1772 = vmatprep.subr.mxu0 0.0
      %1773 = vmatpush1.xpose.msra.mxu0 0.0
      %1774 = vmatprep.subr.mxu0 0.0
      %1775 = vmatpush1.xpose.msra.mxu0 0.0
      %1776 = vmatprep.subr.mxu0 0.0
      %1777 = vmatpush1.xpose.msra.mxu0 0.0
      %1778 = vmatprep.subr.mxu0 0.0
      %1779 = vmatpush1.xpose.msra.mxu0 %v1746
      %1780 = vmatprep.subr.mxu0 0.0
      %1781 = vmatpush2.xpose.msra.mxu0 0.0
      %1782 = vmatprep.subr.mxu0 0.0
      %1783 = vmatpush2.xpose.msra.mxu0 0.0
      %1784 = vmatprep.subr.mxu0 0.0
      %1785 = vmatpush2.xpose.msra.mxu0 0.0
      %1786 = vmatprep.subr.mxu0 0.0
      %1787 = vmatpush2.xpose.msra.mxu0 0.0
      %1788 = vmatprep.subr.mxu0 0.0
      %1789 = vmatpush2.xpose.msra.mxu0 0.0
      %1790 = vmatprep.subr.mxu0 0.0
      %1791 = vmatpush2.xpose.msra.mxu0 0.0
      %1792 = vmatprep.subr.mxu0 0.0
      %1793 = vmatpush2.xpose.msra.mxu0 0.0
      %1794 = vmatprep.subr.mxu0 0.0
      %1795 = vmatpush2.xpose.msra.mxu0 0.0
      %1796 = vmatprep.subr.mxu0 0.0
      %1797 = vmatpush2.xpose.msra.mxu0 0.0
      %1798 = vmatprep.subr.mxu0 0.0
      %1799 = vmatpush2.xpose.msra.mxu0 0.0
      %1800 = vmatprep.subr.mxu0 0.0
      %1801 = vmatpush2.xpose.msra.mxu0 0.0
      %1802 = vmatprep.subr.mxu0 0.0
      %1803 = vmatpush2.xpose.msra.mxu0 0.0
      %1804 = vmatprep.subr.mxu0 0.0
      %1805 = vmatpush2.xpose.msra.mxu0 0.0
      %1806 = vmatprep.subr.mxu0 0.0
      %1807 = vmatpush2.xpose.msra.mxu0 0.0
      %1808 = vmatprep.subr.mxu0 0.0
      %1809 = vmatpush2.xpose.msra.mxu0 0.0
      %1810 = vmatprep.subr.mxu0 0.0
      %1811 = vmatpush2.xpose.msra.mxu0 0.0
      %1812 = vmatprep.mubr.f32.mxu0 0.0
      %1813 = vmatmul.mubr.f32.gmra.mxu0 %v1744
      %v1814 = vpop.f32.mrf.mxu0
      %v1815 = vadd.f32 0.0, %v1814
      %v1816 = vpop.f32.mrf.mxu0
      %1817 = vdwg.mxu0
      %1818 = vrot.lane.b32.xlu0 %v748, 104
      %v1819 = vpop.permute.xlu0 %1818
      %1820 = vrot.lane.b32.xlu0 %v744, 72
      %v1821 = vpop.permute.xlu0 %1820
      %v1822 = vsel %vm752, %v1819, 0
      %v1824 = vsel %vm752, %v1821, 0
      %1826 = vmatprep.subr.mxu0 0.0
      %1827 = vmatpush1.xpose.msra.mxu0 0.0
      %1828 = vmatprep.subr.mxu0 0.0
      %1829 = vmatpush1.xpose.msra.mxu0 0.0
      %1830 = vmatprep.subr.mxu0 0.0
      %1831 = vmatpush1.xpose.msra.mxu0 0.0
      %1832 = vmatprep.subr.mxu0 0.0
      %1833 = vmatpush1.xpose.msra.mxu0 0.0
      %1834 = vmatprep.subr.mxu0 0.0
      %1835 = vmatpush1.xpose.msra.mxu0 0.0
      %1836 = vmatprep.subr.mxu0 0.0
      %1837 = vmatpush1.xpose.msra.mxu0 0.0
      %1838 = vmatprep.subr.mxu0 0.0
      %1839 = vmatpush1.xpose.msra.mxu0 0.0
      %1840 = vmatprep.subr.mxu0 0.0
      %1841 = vmatpush1.xpose.msra.mxu0 0.0
      %1842 = vmatprep.subr.mxu0 0.0
      %1843 = vmatpush1.xpose.msra.mxu0 0.0
      %1844 = vmatprep.subr.mxu0 0.0
      %1845 = vmatpush1.xpose.msra.mxu0 0.0
      %1846 = vmatprep.subr.mxu0 0.0
      %1847 = vmatpush1.xpose.msra.mxu0 0.0
      %1848 = vmatprep.subr.mxu0 0.0
      %1849 = vmatpush1.xpose.msra.mxu0 0.0
      %1850 = vmatprep.subr.mxu0 0.0
      %1851 = vmatpush1.xpose.msra.mxu0 0.0
      %1852 = vmatprep.subr.mxu0 0.0
      %1853 = vmatpush1.xpose.msra.mxu0 0.0
      %1854 = vmatprep.subr.mxu0 0.0
      %1855 = vmatpush1.xpose.msra.mxu0 0.0
      %1856 = vmatprep.subr.mxu0 0.0
      %1857 = vmatpush1.xpose.msra.mxu0 %v1824
      %1858 = vmatprep.subr.mxu0 0.0
      %1859 = vmatpush2.xpose.msra.mxu0 0.0
      %1860 = vmatprep.subr.mxu0 0.0
      %1861 = vmatpush2.xpose.msra.mxu0 0.0
      %1862 = vmatprep.subr.mxu0 0.0
      %1863 = vmatpush2.xpose.msra.mxu0 0.0
      %1864 = vmatprep.subr.mxu0 0.0
      %1865 = vmatpush2.xpose.msra.mxu0 0.0
      %1866 = vmatprep.subr.mxu0 0.0
      %1867 = vmatpush2.xpose.msra.mxu0 0.0
      %1868 = vmatprep.subr.mxu0 0.0
      %1869 = vmatpush2.xpose.msra.mxu0 0.0
      %1870 = vmatprep.subr.mxu0 0.0
      %1871 = vmatpush2.xpose.msra.mxu0 0.0
      %1872 = vmatprep.subr.mxu0 0.0
      %1873 = vmatpush2.xpose.msra.mxu0 0.0
      %1874 = vmatprep.subr.mxu0 0.0
      %1875 = vmatpush2.xpose.msra.mxu0 0.0
      %1876 = vmatprep.subr.mxu0 0.0
      %1877 = vmatpush2.xpose.msra.mxu0 0.0
      %1878 = vmatprep.subr.mxu0 0.0
      %1879 = vmatpush2.xpose.msra.mxu0 0.0
      %1880 = vmatprep.subr.mxu0 0.0
      %1881 = vmatpush2.xpose.msra.mxu0 0.0
      %1882 = vmatprep.subr.mxu0 0.0
      %1883 = vmatpush2.xpose.msra.mxu0 0.0
      %1884 = vmatprep.subr.mxu0 0.0
      %1885 = vmatpush2.xpose.msra.mxu0 0.0
      %1886 = vmatprep.subr.mxu0 0.0
      %1887 = vmatpush2.xpose.msra.mxu0 0.0
      %1888 = vmatprep.subr.mxu0 0.0
      %1889 = vmatpush2.xpose.msra.mxu0 0.0
      %1890 = vmatprep.mubr.f32.mxu0 0.0
      %1891 = vmatmul.mubr.f32.gmra.mxu0 %v1822
      %v1892 = vpop.f32.mrf.mxu0
      %v1893 = vadd.f32 0.0, %v1892
      %v1894 = vpop.f32.mrf.mxu0
      %1895 = vdwg.mxu0
      %v1896 = vsel %vm752, %v1815, -inf
      %1897 = vmax.xlane.f32.xlu0 %v1896
      %v1898 = vpop.xlane.xlu0 %1897
      %v1899 = vsel %vm752, %v1893, -inf
      %1900 = vmax.xlane.f32.xlu0 %v1899
      %v1901 = vpop.xlane.xlu0 %1900
      %v1902 = vsub.f32 %v1815, %v1898
      %v1903 = vsub.f32 %v1893, %v1901
      %v1904 = vmul.f32 %v1902, 1.442695
      %v1905 = vpow.pop %v1904
      %v1906 = vmul.f32 %v1903, 1.442695
      %v1907 = vpow.pop %v1906
      %v1908 = vsel %vm752, %v1905, 0.0
      %1909 = vadd.xlane.f32.xlu0 %v1908
      %v1910 = vpop.xlane.xlu0 %1909
      %v1911 = vsel %vm752, %v1907, 0.0
      %1912 = vadd.xlane.f32.xlu0 %v1911
      %v1913 = vpop.xlane.xlu0 %1912
      %v1914 = vrcp.pop %v1910
      %v1915 = vrcp.pop %v1913
      %v1916 = vmul.f32 %v1905, %v1914
      %v1917 = vmul.f32 %v1907, %v1915
      %1918 = vrot.lane.b32.xlu0 %v739, 40
      %v1919 = vpop.permute.xlu0 %1918
      %v1922 = vsel %vm752, %v1916, 0
      %1924 = vmatprep.subr.mxu0 0.0
      %1925 = vmatpush1.msra.mxu0 0.0
      %1926 = vmatprep.subr.mxu0 0.0
      %1927 = vmatpush1.msra.mxu0 0.0
      %1928 = vmatprep.subr.mxu0 0.0
      %1929 = vmatpush1.msra.mxu0 0.0
      %1930 = vmatprep.subr.mxu0 0.0
      %1931 = vmatpush1.msra.mxu0 0.0
      %1932 = vmatprep.subr.mxu0 0.0
      %1933 = vmatpush1.msra.mxu0 0.0
      %1934 = vmatprep.subr.mxu0 0.0
      %1935 = vmatpush1.msra.mxu0 0.0
      %1936 = vmatprep.subr.mxu0 0.0
      %1937 = vmatpush1.msra.mxu0 0.0
      %1938 = vmatprep.subr.mxu0 0.0
      %1939 = vmatpush1.msra.mxu0 0.0
      %1940 = vmatprep.subr.mxu0 0.0
      %1941 = vmatpush1.msra.mxu0 0.0
      %1942 = vmatprep.subr.mxu0 0.0
      %1943 = vmatpush1.msra.mxu0 0.0
      %1944 = vmatprep.subr.mxu0 0.0
      %1945 = vmatpush1.msra.mxu0 0.0
      %1946 = vmatprep.subr.mxu0 0.0
      %1947 = vmatpush1.msra.mxu0 0.0
      %1948 = vmatprep.subr.mxu0 0.0
      %1949 = vmatpush1.msra.mxu0 0.0
      %1950 = vmatprep.subr.mxu0 0.0
      %1951 = vmatpush1.msra.mxu0 0.0
      %1952 = vmatprep.subr.mxu0 0.0
      %1953 = vmatpush1.msra.mxu0 0.0
      %1954 = vmatprep.subr.mxu0 0.0
      %1955 = vmatpush1.msra.mxu0 %v1919
      %1956 = vmatprep.subr.mxu0 0.0
      %1957 = vmatpush2.msra.mxu0 0.0
      %1958 = vmatprep.subr.mxu0 0.0
      %1959 = vmatpush2.msra.mxu0 0.0
      %1960 = vmatprep.subr.mxu0 0.0
      %1961 = vmatpush2.msra.mxu0 0.0
      %1962 = vmatprep.subr.mxu0 0.0
      %1963 = vmatpush2.msra.mxu0 0.0
      %1964 = vmatprep.subr.mxu0 0.0
      %1965 = vmatpush2.msra.mxu0 0.0
      %1966 = vmatprep.subr.mxu0 0.0
      %1967 = vmatpush2.msra.mxu0 0.0
      %1968 = vmatprep.subr.mxu0 0.0
      %1969 = vmatpush2.msra.mxu0 0.0
      %1970 = vmatprep.subr.mxu0 0.0
      %1971 = vmatpush2.msra.mxu0 0.0
      %1972 = vmatprep.subr.mxu0 0.0
      %1973 = vmatpush2.msra.mxu0 0.0
      %1974 = vmatprep.subr.mxu0 0.0
      %1975 = vmatpush2.msra.mxu0 0.0
      %1976 = vmatprep.subr.mxu0 0.0
      %1977 = vmatpush2.msra.mxu0 0.0
      %1978 = vmatprep.subr.mxu0 0.0
      %1979 = vmatpush2.msra.mxu0 0.0
      %1980 = vmatprep.subr.mxu0 0.0
      %1981 = vmatpush2.msra.mxu0 0.0
      %1982 = vmatprep.subr.mxu0 0.0
      %1983 = vmatpush2.msra.mxu0 0.0
      %1984 = vmatprep.subr.mxu0 0.0
      %1985 = vmatpush2.msra.mxu0 0.0
      %1986 = vmatprep.subr.mxu0 0.0
      %1987 = vmatpush2.msra.mxu0 0.0
      %1988 = vmatprep.mubr.f32.mxu0 0.0
      %1989 = vmatmul.mubr.f32.gmra.mxu0 %v1922
      %v1990 = vpop.f32.mrf.mxu0
      %v1991 = vadd.f32 0.0, %v1990
      %v1992 = vpop.f32.mrf.mxu0
      %1993 = vdwg.mxu0
      %1994 = vrot.lane.b32.xlu0 %v744, 40
      %v1995 = vpop.permute.xlu0 %1994
      %v1998 = vsel %vm752, %v1917, 0
      %2000 = vmatprep.subr.mxu0 0.0
      %2001 = vmatpush1.msra.mxu0 0.0
      %2002 = vmatprep.subr.mxu0 0.0
      %2003 = vmatpush1.msra.mxu0 0.0
      %2004 = vmatprep.subr.mxu0 0.0
      %2005 = vmatpush1.msra.mxu0 0.0
      %2006 = vmatprep.subr.mxu0 0.0
      %2007 = vmatpush1.msra.mxu0 0.0
      %2008 = vmatprep.subr.mxu0 0.0
      %2009 = vmatpush1.msra.mxu0 0.0
      %2010 = vmatprep.subr.mxu0 0.0
      %2011 = vmatpush1.msra.mxu0 0.0
      %2012 = vmatprep.subr.mxu0 0.0
      %2013 = vmatpush1.msra.mxu0 0.0
      %2014 = vmatprep.subr.mxu0 0.0
      %2015 = vmatpush1.msra.mxu0 0.0
      %2016 = vmatprep.subr.mxu0 0.0
      %2017 = vmatpush1.msra.mxu0 0.0
      %2018 = vmatprep.subr.mxu0 0.0
      %2019 = vmatpush1.msra.mxu0 0.0
      %2020 = vmatprep.subr.mxu0 0.0
      %2021 = vmatpush1.msra.mxu0 0.0
      %2022 = vmatprep.subr.mxu0 0.0
      %2023 = vmatpush1.msra.mxu0 0.0
      %2024 = vmatprep.subr.mxu0 0.0
      %2025 = vmatpush1.msra.mxu0 0.0
      %2026 = vmatprep.subr.mxu0 0.0
      %2027 = vmatpush1.msra.mxu0 0.0
      %2028 = vmatprep.subr.mxu0 0.0
      %2029 = vmatpush1.msra.mxu0 0.0
      %2030 = vmatprep.subr.mxu0 0.0
      %2031 = vmatpush1.msra.mxu0 %v1995
      %2032 = vmatprep.subr.mxu0 0.0
      %2033 = vmatpush2.msra.mxu0 0.0
      %2034 = vmatprep.subr.mxu0 0.0
      %2035 = vmatpush2.msra.mxu0 0.0
      %2036 = vmatprep.subr.mxu0 0.0
      %2037 = vmatpush2.msra.mxu0 0.0
      %2038 = vmatprep.subr.mxu0 0.0
      %2039 = vmatpush2.msra.mxu0 0.0
      %2040 = vmatprep.subr.mxu0 0.0
      %2041 = vmatpush2.msra.mxu0 0.0
      %2042 = vmatprep.subr.mxu0 0.0
      %2043 = vmatpush2.msra.mxu0 0.0
      %2044 = vmatprep.subr.mxu0 0.0
      %2045 = vmatpush2.msra.mxu0 0.0
      %2046 = vmatprep.subr.mxu0 0.0
      %2047 = vmatpush2.msra.mxu0 0.0
      %2048 = vmatprep.subr.mxu0 0.0
      %2049 = vmatpush2.msra.mxu0 0.0
      %2050 = vmatprep.subr.mxu0 0.0
      %2051 = vmatpush2.msra.mxu0 0.0
      %2052 = vmatprep.subr.mxu0 0.0
      %2053 = vmatpush2.msra.mxu0 0.0
      %2054 = vmatprep.subr.mxu0 0.0
      %2055 = vmatpush2.msra.mxu0 0.0
      %2056 = vmatprep.subr.mxu0 0.0
      %2057 = vmatpush2.msra.mxu0 0.0
      %2058 = vmatprep.subr.mxu0 0.0
      %2059 = vmatpush2.msra.mxu0 0.0
      %2060 = vmatprep.subr.mxu0 0.0
      %2061 = vmatpush2.msra.mxu0 0.0
      %2062 = vmatprep.subr.mxu0 0.0
      %2063 = vmatpush2.msra.mxu0 0.0
      %2064 = vmatprep.mubr.f32.mxu0 0.0
      %2065 = vmatmul.mubr.f32.gmra.mxu0 %v1998
      %v2066 = vpop.f32.mrf.mxu0
      %v2067 = vadd.f32 0.0, %v2066
      %v2068 = vpop.f32.mrf.mxu0
      %2069 = vdwg.mxu0
      %2072 = vrot.lane.b32.xlu0 %v1331, 8
      %v2073 = vpop.permute.xlu0 %2072
      %2074 = vrot.lane.b32.xlu0 %v1407, 8
      %v2075 = vpop.permute.xlu0 %2074
      %2080 = vrot.lane.b32.xlu0 %v1661, 16
      %v2081 = vpop.permute.xlu0 %2080
      %2082 = vrot.lane.b32.xlu0 %v1737, 16
      %v2083 = vpop.permute.xlu0 %2082
      %2088 = vrot.lane.b32.xlu0 %v1991, 24
      %v2089 = vpop.permute.xlu0 %2088
      %2090 = vrot.lane.b32.xlu0 %v2067, 24
      %v2091 = vpop.permute.xlu0 %2090
      %v2094 = vsel %vm752, %v1001, %v2073
      %v2095 = vsel %vm752, %v1077, %v2075
      %vm2096 = vcmask 130048
      %v2097 = vsel %vm2096, %v2094, %v2081
      %v2098 = vsel %vm2096, %v2095, %v2083
      %vm2099 = vcmask 195584
      %v2100 = vsel %vm2099, %v2097, %v2089
      %v2101 = vsel %vm2099, %v2098, %v2091
      %v2102 = vld [vmem:[%s572] sm:$0xff]
      %v2103 = vld [vmem:[%s572 + $0x8] sm:$0xff]
      %v2104 = vld [vmem:[%s572 + $0x10] sm:$0xff]
      %v2105 = vld [vmem:[%s572 + $0x18] sm:$0xff]
      %v2106 = vld [vmem:[%s575] sm:$0x1]
      %v2108 = vlaneseq
      %v2109 = vshrl.u32 %v2108, 7
      %v2110 = vsub.s32 0, %v2109
      %v2111 = vrot.slane %v2106, %v2110
      %v2114 = vsel %vm611, %v2100, 0
      %v2117 = vsel %vm611, %v2101, 0
      %2119 = vmatprep.subr.mxu0 0.0
      %2120 = vmatpush1.msra.mxu0 0.0
      %2121 = vmatprep.subr.mxu0 0.0
      %2122 = vmatpush1.msra.mxu0 0.0
      %2123 = vmatprep.subr.mxu0 0.0
      %2124 = vmatpush1.msra.mxu0 0.0
      %2125 = vmatprep.subr.mxu0 0.0
      %2126 = vmatpush1.msra.mxu0 0.0
      %2127 = vmatprep.subr.mxu0 0.0
      %2128 = vmatpush1.msra.mxu0 0.0
      %2129 = vmatprep.subr.mxu0 0.0
      %2130 = vmatpush1.msra.mxu0 0.0
      %2131 = vmatprep.subr.mxu0 0.0
      %2132 = vmatpush1.msra.mxu0 0.0
      %2133 = vmatprep.subr.mxu0 0.0
      %2134 = vmatpush1.msra.mxu0 0.0
      %2135 = vmatprep.subr.mxu0 0.0
      %2136 = vmatpush1.msra.mxu0 0.0
      %2137 = vmatprep.subr.mxu0 0.0
      %2138 = vmatpush1.msra.mxu0 0.0
      %2139 = vmatprep.subr.mxu0 0.0
      %2140 = vmatpush1.msra.mxu0 0.0
      %2141 = vmatprep.subr.mxu0 0.0
      %2142 = vmatpush1.msra.mxu0 0.0
      %2143 = vmatprep.subr.mxu0 0.0
      %2144 = vmatpush1.msra.mxu0 %v2105
      %2145 = vmatprep.subr.mxu0 0.0
      %2146 = vmatpush1.msra.mxu0 %v2104
      %2147 = vmatprep.subr.mxu0 0.0
      %2148 = vmatpush1.msra.mxu0 %v2103
      %2149 = vmatprep.subr.mxu0 0.0
      %2150 = vmatpush1.msra.mxu0 %v2102
      %2151 = vmatprep.subr.mxu0 0.0
      %2152 = vmatpush2.msra.mxu0 0.0
      %2153 = vmatprep.subr.mxu0 0.0
      %2154 = vmatpush2.msra.mxu0 0.0
      %2155 = vmatprep.subr.mxu0 0.0
      %2156 = vmatpush2.msra.mxu0 0.0
      %2157 = vmatprep.subr.mxu0 0.0
      %2158 = vmatpush2.msra.mxu0 0.0
      %2159 = vmatprep.subr.mxu0 0.0
      %2160 = vmatpush2.msra.mxu0 0.0
      %2161 = vmatprep.subr.mxu0 0.0
      %2162 = vmatpush2.msra.mxu0 0.0
      %2163 = vmatprep.subr.mxu0 0.0
      %2164 = vmatpush2.msra.mxu0 0.0
      %2165 = vmatprep.subr.mxu0 0.0
      %2166 = vmatpush2.msra.mxu0 0.0
      %2167 = vmatprep.subr.mxu0 0.0
      %2168 = vmatpush2.msra.mxu0 0.0
      %2169 = vmatprep.subr.mxu0 0.0
      %2170 = vmatpush2.msra.mxu0 0.0
      %2171 = vmatprep.subr.mxu0 0.0
      %2172 = vmatpush2.msra.mxu0 0.0
      %2173 = vmatprep.subr.mxu0 0.0
      %2174 = vmatpush2.msra.mxu0 0.0
      %2175 = vmatprep.subr.mxu0 0.0
      %2176 = vmatpush2.msra.mxu0 0.0
      %2177 = vmatprep.subr.mxu0 0.0
      %2178 = vmatpush2.msra.mxu0 0.0
      %2179 = vmatprep.subr.mxu0 0.0
      %2180 = vmatpush2.msra.mxu0 0.0
      %2181 = vmatprep.subr.mxu0 0.0
      %2182 = vmatpush2.msra.mxu0 0.0
      %2183 = vmatprep.mubr.f32.mxu0 0.0
      %2184 = vmatmul.mubr.f32.gmra.mxu0 %v2114
      %v2185 = vpop.f32.mrf.mxu0
      %v2186 = vadd.f32 %v2111, %v2185
      %v2187 = vpop.f32.mrf.mxu0
      %2188 = vmatprep.mubr.f32.mxu0 0.0
      %2189 = vmatmul.mubr.f32.gmra.mxu0 %v2117
      %v2190 = vpop.f32.mrf.mxu0
      %v2191 = vadd.f32 %v2111, %v2190
      %v2192 = vpop.f32.mrf.mxu0
      %2193 = vdwg.mxu0
      %v2194 = vadd.f32 %v607, %v2186
      %v2195 = vadd.f32 %v608, %v2191
      %v2196 = vld [vmem:[%s578] sm:$0x1]
      %v2197 = vld [vmem:[%s581] sm:$0x1]
      %v2198 = vsel %vm611, %v2194, 0.0
      %2199 = vadd.xlane.f32.xlu0 %v2198
      %v2200 = vpop.xlane.xlu0 %2199
      %v2201 = vsel %vm611, %v2195, 0.0
      %2202 = vadd.xlane.f32.xlu0 %v2201
      %v2203 = vpop.xlane.xlu0 %2202
      %v2204 = vmul.f32 %v2200, %v618
      %v2205 = vmul.f32 %v2203, %v618
      %v2206 = vsub.f32 %v2194, %v2204
      %v2207 = vsub.f32 %v2195, %v2205
      %v2208 = vmul.f32 %v2206, %v2206
      %v2209 = vmul.f32 %v2207, %v2207
      %v2210 = vsel %vm611, %v2208, 0.0
      %2211 = vadd.xlane.f32.xlu0 %v2210
      %v2212 = vpop.xlane.xlu0 %2211
      %v2213 = vsel %vm611, %v2209, 0.0
      %2214 = vadd.xlane.f32.xlu0 %v2213
      %v2215 = vpop.xlane.xlu0 %2214
      %v2216 = vmul.f32 %v2212, %v618
      %v2217 = vmul.f32 %v2215, %v618
      %v2218 = vadd.f32 %v2216, 1e-05
      %v2219 = vadd.f32 %v2217, 1e-05
      %v2220 = vrsqrt.pop %v2218
      %v2221 = vrsqrt.pop %v2219
      %v2222 = vmul.f32 %v2206, %v2220
      %v2223 = vmul.f32 %v2207, %v2221
      %v2225 = vlaneseq
      %v2226 = vshrl.u32 %v2225, 7
      %v2227 = vsub.s32 0, %v2226
      %v2228 = vrot.slane %v2196, %v2227
      %v2230 = vmul.f32 %v2222, %v2228
      %v2231 = vmul.f32 %v2223, %v2228
      %v2233 = vlaneseq
      %v2234 = vshrl.u32 %v2233, 7
      %v2235 = vsub.s32 0, %v2234
      %v2236 = vrot.slane %v2197, %v2235
      %v2238 = vadd.f32 %v2230, %v2236
      %v2239 = vadd.f32 %v2231, %v2236
      %v2240 = vld [vmem:[%s586] sm:$0xff]
      %v2241 = vld [vmem:[%s586 + $0x8] sm:$0xff]
      %v2242 = vld [vmem:[%s586 + $0x10] sm:$0xff]
      %v2243 = vld [vmem:[%s586 + $0x18] sm:$0xff]
      %v2244 = vld [vmem:[%s589] sm:$0x1]
      %v2246 = vlaneseq
      %v2247 = vshrl.u32 %v2246, 7
      %v2248 = vsub.s32 0, %v2247
      %v2249 = vrot.slane %v2244, %v2248
      %v2252 = vsel %vm611, %v2238, 0
      %v2255 = vsel %vm611, %v2239, 0
      %2257 = vmatprep.subr.mxu0 0.0
      %2258 = vmatpush1.msra.mxu0 0.0
      %2259 = vmatprep.subr.mxu0 0.0
      %2260 = vmatpush1.msra.mxu0 0.0
      %2261 = vmatprep.subr.mxu0 0.0
      %2262 = vmatpush1.msra.mxu0 0.0
      %2263 = vmatprep.subr.mxu0 0.0
      %2264 = vmatpush1.msra.mxu0 0.0
      %2265 = vmatprep.subr.mxu0 0.0
      %2266 = vmatpush1.msra.mxu0 0.0
      %2267 = vmatprep.subr.mxu0 0.0
      %2268 = vmatpush1.msra.mxu0 0.0
      %2269 = vmatprep.subr.mxu0 0.0
      %2270 = vmatpush1.msra.mxu0 0.0
      %2271 = vmatprep.subr.mxu0 0.0
      %2272 = vmatpush1.msra.mxu0 0.0
      %2273 = vmatprep.subr.mxu0 0.0
      %2274 = vmatpush1.msra.mxu0 0.0
      %2275 = vmatprep.subr.mxu0 0.0
      %2276 = vmatpush1.msra.mxu0 0.0
      %2277 = vmatprep.subr.mxu0 0.0
      %2278 = vmatpush1.msra.mxu0 0.0
      %2279 = vmatprep.subr.mxu0 0.0
      %2280 = vmatpush1.msra.mxu0 0.0
      %2281 = vmatprep.subr.mxu0 0.0
      %2282 = vmatpush1.msra.mxu0 %v2243
      %2283 = vmatprep.subr.mxu0 0.0
      %2284 = vmatpush1.msra.mxu0 %v2242
      %2285 = vmatprep.subr.mxu0 0.0
      %2286 = vmatpush1.msra.mxu0 %v2241
      %2287 = vmatprep.subr.mxu0 0.0
      %2288 = vmatpush1.msra.mxu0 %v2240
      %2289 = vmatprep.subr.mxu0 0.0
      %2290 = vmatpush2.msra.mxu0 0.0
      %2291 = vmatprep.subr.mxu0 0.0
      %2292 = vmatpush2.msra.mxu0 0.0
      %2293 = vmatprep.subr.mxu0 0.0
      %2294 = vmatpush2.msra.mxu0 0.0
      %2295 = vmatprep.subr.mxu0 0.0
      %2296 = vmatpush2.msra.mxu0 0.0
      %2297 = vmatprep.subr.mxu0 0.0
      %2298 = vmatpush2.msra.mxu0 0.0
      %2299 = vmatprep.subr.mxu0 0.0
      %2300 = vmatpush2.msra.mxu0 0.0
      %2301 = vmatprep.subr.mxu0 0.0
      %2302 = vmatpush2.msra.mxu0 0.0
      %2303 = vmatprep.subr.mxu0 0.0
      %2304 = vmatpush2.msra.mxu0 0.0
      %2305 = vmatprep.subr.mxu0 0.0
      %2306 = vmatpush2.msra.mxu0 0.0
      %2307 = vmatprep.subr.mxu0 0.0
      %2308 = vmatpush2.msra.mxu0 0.0
      %2309 = vmatprep.subr.mxu0 0.0
      %2310 = vmatpush2.msra.mxu0 0.0
      %2311 = vmatprep.subr.mxu0 0.0
      %2312 = vmatpush2.msra.mxu0 0.0
      %2313 = vmatprep.subr.mxu0 0.0
      %2314 = vmatpush2.msra.mxu0 0.0
      %2315 = vmatprep.subr.mxu0 0.0
      %2316 = vmatpush2.msra.mxu0 0.0
      %2317 = vmatprep.subr.mxu0 0.0
      %2318 = vmatpush2.msra.mxu0 0.0
      %2319 = vmatprep.subr.mxu0 0.0
      %2320 = vmatpush2.msra.mxu0 0.0
      %2321 = vmatprep.mubr.f32.mxu0 0.0
      %2322 = vmatmul.mubr.f32.gmra.mxu0 %v2252
      %v2323 = vpop.f32.mrf.mxu0
      %v2324 = vadd.f32 %v2249, %v2323
      %v2325 = vpop.f32.mrf.mxu0
      %2326 = vmatprep.mubr.f32.mxu0 0.0
      %2327 = vmatmul.mubr.f32.gmra.mxu0 %v2255
      %v2328 = vpop.f32.mrf.mxu0
      %v2329 = vadd.f32 %v2249, %v2328
      %v2330 = vpop.f32.mrf.mxu0
      %2331 = vdwg.mxu0
      %v2332 = vmul.f32 %v2324, 0.5
      %v2333 = vmul.f32 %v2329, 0.5
      %v2334 = vmul.f32 %v2324, 0.70710677
      %v2335 = vmul.f32 %v2329, 0.70710677
      %v2336 = verf.f32.pop %v2334
      %v2337 = verf.f32.pop %v2335
      %v2338 = vadd.f32 %v2336, 1.0
      %v2339 = vadd.f32 %v2337, 1.0
      %v2340 = vmul.f32 %v2332, %v2338
      %v2341 = vmul.f32 %v2333, %v2339
      %v2342 = vld [vmem:[%s594] sm:$0xff]
      %v2343 = vld [vmem:[%s594 + $0x8] sm:$0xff]
      %v2344 = vld [vmem:[%s594 + $0x10] sm:$0xff]
      %v2345 = vld [vmem:[%s594 + $0x18] sm:$0xff]
      %v2346 = vld [vmem:[%s594 + $0x20] sm:$0xff]
      %v2347 = vld [vmem:[%s594 + $0x28] sm:$0xff]
      %v2348 = vld [vmem:[%s594 + $0x30] sm:$0xff]
      %v2349 = vld [vmem:[%s594 + $0x38] sm:$0xff]
      %v2350 = vld [vmem:[%s594 + $0x40] sm:$0xff]
      %v2351 = vld [vmem:[%s594 + $0x48] sm:$0xff]
      %v2352 = vld [vmem:[%s594 + $0x50] sm:$0xff]
      %v2353 = vld [vmem:[%s594 + $0x58] sm:$0xff]
      %v2354 = vld [vmem:[%s597] sm:$0x1]
      %v2356 = vlaneseq
      %v2357 = vshrl.u32 %v2356, 7
      %v2358 = vsub.s32 0, %v2357
      %v2359 = vrot.slane %v2354, %v2358
      %vm2361 = vcmask 785408
      %v2363 = vsel %vm2361, %v2340, 0
      %v2366 = vsel %vm2361, %v2341, 0
      %2368 = vmatprep.subr.mxu0 0.0
      %2369 = vmatpush1.msra.mxu0 0.0
      %2370 = vmatprep.subr.mxu0 0.0
      %2371 = vmatpush1.msra.mxu0 0.0
      %2372 = vmatprep.subr.mxu0 0.0
      %2373 = vmatpush1.msra.mxu0 0.0
      %2374 = vmatprep.subr.mxu0 0.0
      %2375 = vmatpush1.msra.mxu0 0.0
      %2376 = vmatprep.subr.mxu0 0.0
      %2377 = vmatpush1.msra.mxu0 %v2353
      %2378 = vmatprep.subr.mxu0 0.0
      %2379 = vmatpush1.msra.mxu0 %v2352
      %2380 = vmatprep.subr.mxu0 0.0
      %2381 = vmatpush1.msra.mxu0 %v2351
      %2382 = vmatprep.subr.mxu0 0.0
      %2383 = vmatpush1.msra.mxu0 %v2350
      %2384 = vmatprep.subr.mxu0 0.0
      %2385 = vmatpush1.msra.mxu0 %v2349
      %2386 = vmatprep.subr.mxu0 0.0
      %2387 = vmatpush1.msra.mxu0 %v2348
      %2388 = vmatprep.subr.mxu0 0.0
      %2389 = vmatpush1.msra.mxu0 %v2347
      %2390 = vmatprep.subr.mxu0 0.0
      %2391 = vmatpush1.msra.mxu0 %v2346
      %2392 = vmatprep.subr.mxu0 0.0
      %2393 = vmatpush1.msra.mxu0 %v2345
      %2394 = vmatprep.subr.mxu0 0.0
      %2395 = vmatpush1.msra.mxu0 %v2344
      %2396 = vmatprep.subr.mxu0 0.0
      %2397 = vmatpush1.msra.mxu0 %v2343
      %2398 = vmatprep.subr.mxu0 0.0
      %2399 = vmatpush1.msra.mxu0 %v2342
      %2400 = vmatprep.subr.mxu0 0.0
      %2401 = vmatpush2.msra.mxu0 0.0
      %2402 = vmatprep.subr.mxu0 0.0
      %2403 = vmatpush2.msra.mxu0 0.0
      %2404 = vmatprep.subr.mxu0 0.0
      %2405 = vmatpush2.msra.mxu0 0.0
      %2406 = vmatprep.subr.mxu0 0.0
      %2407 = vmatpush2.msra.mxu0 0.0
      %2408 = vmatprep.subr.mxu0 0.0
      %2409 = vmatpush2.msra.mxu0 0.0
      %2410 = vmatprep.subr.mxu0 0.0
      %2411 = vmatpush2.msra.mxu0 0.0
      %2412 = vmatprep.subr.mxu0 0.0
      %2413 = vmatpush2.msra.mxu0 0.0
      %2414 = vmatprep.subr.mxu0 0.0
      %2415 = vmatpush2.msra.mxu0 0.0
      %2416 = vmatprep.subr.mxu0 0.0
      %2417 = vmatpush2.msra.mxu0 0.0
      %2418 = vmatprep.subr.mxu0 0.0
      %2419 = vmatpush2.msra.mxu0 0.0
      %2420 = vmatprep.subr.mxu0 0.0
      %2421 = vmatpush2.msra.mxu0 0.0
      %2422 = vmatprep.subr.mxu0 0.0
      %2423 = vmatpush2.msra.mxu0 0.0
      %2424 = vmatprep.subr.mxu0 0.0
      %2425 = vmatpush2.msra.mxu0 0.0
      %2426 = vmatprep.subr.mxu0 0.0
      %2427 = vmatpush2.msra.mxu0 0.0
      %2428 = vmatprep.subr.mxu0 0.0
      %2429 = vmatpush2.msra.mxu0 0.0
      %2430 = vmatprep.subr.mxu0 0.0
      %2431 = vmatpush2.msra.mxu0 0.0
      %2432 = vmatprep.mubr.f32.mxu0 0.0
      %2433 = vmatmul.mubr.f32.gmra.mxu0 %v2363
      %v2434 = vpop.f32.mrf.mxu0
      %v2435 = vadd.f32 %v2359, %v2434
      %v2436 = vpop.f32.mrf.mxu0
      %2437 = vmatprep.mubr.f32.mxu0 0.0
      %2438 = vmatmul.mubr.f32.gmra.mxu0 %v2366
      %v2439 = vpop.f32.mrf.mxu0
      %v2440 = vadd.f32 %v2359, %v2439
      %v2441 = vpop.f32.mrf.mxu0
      %2442 = vdwg.mxu0
      %v2443 = vadd.f32 %v2194, %v2435
      %v2444 = vadd.f32 %v2195, %v2440
      %2445 = vst.msk [vmem:[#allocation2] sm:$0xff] %vm611, %v2443
      %2446 = vst.msk [vmem:[#allocation2 + $0x8] sm:$0xff] %vm611, %v2444
      %p2447 = scmp.eq.s32.totalorder %s24, 1
      // Predicated region
      $region77: #{transformer_forward.1} parent=71 // pred_check
        %p2448 = pneg %p2447
      $region78: #{transformer_forward.1} parent=71 // pred_check_branch
        %2450 = sbr.rel (%p2448) target = $region80
      $region79: #{transformer_forward.1} parent=71 // pred_region
        %2451 = vst.msk [vmem:[%s13] sm:$0xff] %vm611, %v2443
        %2452 = vst.msk [vmem:[%s13 + $0x8] sm:$0xff] %vm611, %v2444
      $region80: #{transformer_forward.1} parent=71 // pred_fallthru
        _
      // Predicated region
      $region81: #{transformer_forward.1} parent=71 // pred_check
        %p2453 = pneg %p370
      $region82: #{transformer_forward.1} parent=71 // pred_check_branch
        %2455 = sbr.rel (%p2453) target = $region84
      $region83: #{transformer_forward.1} parent=71 // pred_region
        _
      $region84: #{transformer_forward.1} parent=71 // pred_fallthru
        _
      // Predicated region
      $region85: #{transformer_forward.1} parent=71 // pred_check
        %p2456 = pneg %p370
      $region86: #{transformer_forward.1} parent=71 // pred_check_branch
        %2458 = sbr.rel (%p2456) target = $region88
      $region87: #{transformer_forward.1} parent=71 // pred_region
        _
      $region88: #{transformer_forward.1} parent=71 // pred_fallthru
        _
    $region72: #{transformer_forward.1} parent=5 // pred_fallthru
      _
    %p2459 = scmp.le.s32.totalorder 2, %s19
    // Predicated region
    $region89: #{transformer_forward.1} parent=5 // pred_check
      %p2460 = pneg %p2459
    $region90: #{transformer_forward.1} parent=5 // pred_check_branch
      %2462 = sbr.rel (%p2460) target = $region92
    $region91: #{transformer_forward.1} parent=5 // pred_region
      %s2463 = ssub.s32 %s19, 2
    $region92: #{transformer_forward.1} parent=5 // pred_fallthru
      _
  $region6: #{transformer_forward.1} parent=0 // loop_footer
    %s23 = sadd.s32 1, %s19
  $region7: #{transformer_forward.1} parent=0 // loop_footer_branch
    %18 = sbr.rel target = $region3
  $region8: #{transformer_forward.1} parent=0 // loop_exit
    _

</llo_original>
